<compile_context>
chip_gen: v6e
topology: v6e:2x2x1
jax: 0.10.0
libtpu: 0.0.40
codegen_flags: <defaults>
</compile_context>

<pallas_src>
import jax
import jax.numpy as jnp
from jax.experimental import pallas as pl
from jax.experimental.pallas import tpu as pltpu


def combined_lr_lstm_kernel(x_ref, w_ih_ref, b_ref, w_hh_ref, w_out_ref,
                            b_out_ref, lr_last_ref, out_ref, xproj_ref):
    """Whole forward in one invocation (everything VMEM resident).

    x_ref:       (T*Bp, F)     time-major, batch-padded concat([ts, lr]), bf16
    w_ih_ref:    (F, 4Hp)      input weights (transposed, gate blocks i,f,g,o), bf16
    b_ref:       (1, 4Hp)      b_ih + b_hh (gate-block padded), f32
    w_hh_ref:    (Hp, 4Hp)     hidden weights (transposed, padded), bf16
    w_out_ref:   (Hp, lr_fp)   output Linear weight (transposed, padded), bf16
    b_out_ref:   (1, lr_fp)    output Linear bias (padded), f32
    lr_last_ref: (Bp, lr_fp)   lr[:, -1, :] residual (padded), f32
    out_ref:     (Bp, lr_fp)   f32
    xproj_ref:   (T*Bp, 4Hp)   f32 VMEM scratch for the hoisted input projection
    """
    Bp = out_ref.shape[0]
    T = x_ref.shape[0] // Bp
    Hp = w_hh_ref.shape[0]

    # ---- Phase 1: hoisted input projection: one bf16 MXU matmul over all T. --
    xproj_ref[...] = (jnp.dot(x_ref[...], w_ih_ref[...],
                              preferred_element_type=jnp.float32) + b_ref[...])

    # ---- Phase 2: serial recurrence. h/c stay in vregs (f32 VPU math).  ------
    # W_hh is read from VMEM inside the step (bf16) rather than held live
    # across the unrolled loop -> no vreg spills on the critical path.
    h = jnp.zeros((Bp, Hp), jnp.float32)
    c = jnp.zeros((Bp, Hp), jnp.float32)
    for t in range(T):              # static T -> fully unrolled, static slices
        gates = xproj_ref[t * Bp:(t + 1) * Bp, :] + jnp.dot(
            h.astype(jnp.bfloat16), w_hh_ref[...],
            preferred_element_type=jnp.float32)
        # PyTorch gate order i, f, g, o.  Hp is a multiple of 128 so every
        # slice is lane-aligned (no masked sub-lane ops).
        i = jax.nn.sigmoid(gates[:, 0 * Hp:1 * Hp])
        f = jax.nn.sigmoid(gates[:, 1 * Hp:2 * Hp])
        g = jnp.tanh(gates[:, 2 * Hp:3 * Hp])
        o = jax.nn.sigmoid(gates[:, 3 * Hp:4 * Hp])
        c = f * c + i * g
        h = o * jnp.tanh(c)
    # TODO(synk): stationary-RHS MXU path (pltpu.matmul_push_rhs/acc_lhs/pop)
    # and T-chunked pipelined grid for large T; not needed at these sizes.

    # ---- Phase 3: output head + residual, lane-dense (128-wide) store. -------
    out_ref[...] = (jnp.dot(h.astype(jnp.bfloat16), w_out_ref[...],
                            preferred_element_type=jnp.float32)
                    + b_out_ref[...] + lr_last_ref[...]).astype(out_ref.dtype)


def _round_up(x, m):
    return ((x + m - 1) // m) * m


def _pad_gate_cols(w, H, Hp):
    """Pad the trailing 4H (gate-blocked i,f,g,o) axis to 4*Hp with zeros."""
    lead = w.shape[:-1]
    w4 = w.reshape(lead + (4, H))
    w4 = jnp.pad(w4, [(0, 0)] * len(lead) + [(0, 0), (0, Hp - H)])
    return w4.reshape(lead + (4 * Hp,))


def combined_lr_forward(ts, lr, params):
    """JAX wrapper: concat/flatten/padding done here; one pallas_call."""
    B, T, ts_f = ts.shape
    lr_f = lr.shape[2]
    F = ts_f + lr_f
    H = params["w_hh"].shape[0]

    Bp = max(_round_up(B, 8), 8)          # sublane-aligned batch
    Hp = _round_up(H, 128)                # lane-aligned gate blocks
    lr_fp = _round_up(lr_f, 128)          # lane-dense output stores

    # Weights: gate-block pad to Hp; MXU operands cast to bf16 (f32 accumulate).
    w_ih = _pad_gate_cols(params["w_ih"], H, Hp).astype(jnp.bfloat16)       # (F, 4Hp)
    b = _pad_gate_cols(params["b"], H, Hp)                                  # (1, 4Hp)
    w_hh = _pad_gate_cols(jnp.pad(params["w_hh"], ((0, Hp - H), (0, 0))),
                          H, Hp).astype(jnp.bfloat16)                       # (Hp, 4Hp)
    w_out = jnp.pad(params["w_out"],
                    ((0, Hp - H), (0, lr_fp - lr_f))).astype(jnp.bfloat16)  # (Hp, lr_fp)
    b_out = jnp.pad(params["b_out"], ((0, 0), (0, lr_fp - lr_f)))           # (1, lr_fp)

    # Activations: concat + time-major + batch pad + flatten in the wrapper
    # (cheap XLA layout ops) so the kernel never reshapes a VMEM layout.
    x = jnp.concatenate([ts, lr], axis=2)                                   # (B, T, F)
    x_tm = jnp.pad(jnp.transpose(x, (1, 0, 2)), ((0, 0), (0, Bp - B), (0, 0)))
    x_flat = x_tm.reshape(T * Bp, F).astype(jnp.bfloat16)                   # (T*Bp, F)
    # Kept as a tiny (4 KB) padded input so the output store stays lane-dense.
    lr_last = jnp.pad(lr[:, -1, :], ((0, Bp - B), (0, lr_fp - lr_f)))       # (Bp, lr_fp)

    # Honest single-buffered VMEM footprint (grid-less call) + headroom,
    # capped below the physical per-core VMEM of the running generation.
    resident_bytes = (x_flat.size * 2 + w_ih.size * 2 + w_hh.size * 2
                      + w_out.size * 2 + b.size * 4 + b_out.size * 4
                      + lr_last.size * 4 + Bp * lr_fp * 4
                      + T * Bp * 4 * Hp * 4)
    try:
        vmem_cap = int(pltpu.get_tpu_info().vmem_capacity_bytes)
    except Exception:
        vmem_cap = 64 << 20            # v7x per-TensorCore (smallest case)
    vmem_limit = int(min(max(resident_bytes + (8 << 20), 16 << 20),
                         vmem_cap - (8 << 20)))

    flops = (2 * T * Bp * F * 4 * Hp          # input projection
             + 2 * T * Bp * Hp * 4 * Hp       # recurrence
             + 2 * Bp * Hp * lr_fp)           # output head
    cost = pl.CostEstimate(flops=flops,
                           transcendentals=5 * T * Bp * Hp,
                           bytes_accessed=resident_bytes)

    out = pl.pallas_call(
        combined_lr_lstm_kernel,
        out_shape=jax.ShapeDtypeStruct((Bp, lr_fp), jnp.float32),
        in_specs=[pl.BlockSpec(memory_space=pltpu.MemorySpace.VMEM)] * 7,
        out_specs=pl.BlockSpec(memory_space=pltpu.MemorySpace.VMEM),
        scratch_shapes=[pltpu.VMEM((T * Bp, 4 * Hp), jnp.float32)],
        compiler_params=pltpu.CompilerParams(vmem_limit_bytes=vmem_limit),
        cost_estimate=cost,
    )(x_flat, w_ih, b, w_hh, w_out, b_out, lr_last)
    # TODO(synk): once Bp >= 16, add a leading batch grid axis with
    # dimension_semantics=("parallel",) to use both v7x TensorCores.

    return out[:B, :lr_f][:, None, :]                                       # (B, 1, lr_f)


def init_params(key, ts_features, lr_features, hidden):
    """Deterministic synthetic weights (PyTorch-style uniform(-1/sqrt(H), 1/sqrt(H)))."""
    F = ts_features + lr_features
    k = 1.0 / float(hidden) ** 0.5
    keys = jax.random.split(key, 6)
    u = lambda kk, shape: jax.random.uniform(kk, shape, jnp.float32, -k, k)
    w_ih = u(keys[0], (F, 4 * hidden))
    w_hh = u(keys[1], (hidden, 4 * hidden))
    b_ih = u(keys[2], (1, 4 * hidden))
    b_hh = u(keys[3], (1, 4 * hidden))
    w_out = u(keys[4], (hidden, lr_features))
    b_out = u(keys[5], (1, lr_features))
    return dict(w_ih=w_ih, w_hh=w_hh, b=b_ih + b_hh, w_out=w_out, b_out=b_out)


def reference_forward(ts, lr, params):
    """Pure-JAX f32 reference of the same math for a correctness check."""
    x = jnp.concatenate([ts, lr], axis=2)
    B, T, _ = x.shape
    H = params["w_hh"].shape[0]
    h = jnp.zeros((B, H), jnp.float32)
    c = jnp.zeros((B, H), jnp.float32)
    for t in range(T):
        gates = x[:, t, :] @ params["w_ih"] + h @ params["w_hh"] + params["b"]
        i = jax.nn.sigmoid(gates[:, :H])
        f = jax.nn.sigmoid(gates[:, H:2 * H])
        g = jnp.tanh(gates[:, 2 * H:3 * H])
        o = jax.nn.sigmoid(gates[:, 3 * H:])
        c = f * c + i * g
        h = o * jnp.tanh(c)
    y = h @ params["w_out"] + params["b_out"]
    return y[:, None, :] + lr[:, -1:, :]


if __name__ == "__main__":
    key = jax.random.PRNGKey(0)
    B, T, ts_f, lr_f, H = 2, 8, 4, 4, 32

    k_ts, k_lr, k_p = jax.random.split(key, 3)
    ts = jax.random.normal(k_ts, (B, T, ts_f), jnp.float32)
    lr = jax.random.normal(k_lr, (B, T, lr_f), jnp.float32)
    params = init_params(k_p, ts_f, lr_f, H)

    out = combined_lr_forward(ts, lr, params)
    jax.block_until_ready(out)

    ref = reference_forward(ts, lr, params)
    assert out.shape == (B, 1, lr_f), out.shape
    # bf16 MXU operands (f32 accumulation) -> TPU-matmul tolerance vs the f32
    # reference, as flagged in the perf review.
    assert jnp.allclose(out, ref, atol=2e-2, rtol=2e-2), (out, ref)

    print("KERNEL_OK")
</pallas_src>

<mosaic_0001>
module attributes {stable_mosaic.version = 11 : i64} {
  func.func @combined_lr_lstm_kernel(%arg0: memref<64x8xbf16, #tpu.memory_space<vmem>>, %arg1: memref<8x512xbf16, #tpu.memory_space<vmem>>, %arg2: memref<1x512xf32, #tpu.memory_space<vmem>>, %arg3: memref<128x512xbf16, #tpu.memory_space<vmem>>, %arg4: memref<128x128xbf16, #tpu.memory_space<vmem>>, %arg5: memref<1x128xf32, #tpu.memory_space<vmem>>, %arg6: memref<8x128xf32, #tpu.memory_space<vmem>>, %arg7: memref<8x128xf32, #tpu.memory_space<vmem>>, %arg8: memref<64x512xf32, #tpu.memory_space<vmem>>) attributes {dimension_semantics = [], scalar_prefetch = 0 : i64, scratch_operands = 1 : i64, tpu.core_type = #tpu.core_type<tc>} {
    %c0 = arith.constant 0 : index
    %c0_0 = arith.constant 0 : index
    %0 = vector.load %arg0[%c0, %c0_0] : memref<64x8xbf16, #tpu.memory_space<vmem>>, vector<64x8xbf16>
    %c0_1 = arith.constant 0 : index
    %c0_2 = arith.constant 0 : index
    %1 = vector.load %arg1[%c0_1, %c0_2] : memref<8x512xbf16, #tpu.memory_space<vmem>>, vector<8x512xbf16>
    %cst = arith.constant dense<0.000000e+00> : vector<64x512xf32>
    %2 = tpu.matmul %0, %1, %cst {dimension_numbers = #tpu.dot_dimension_numbers<[1], [0], [0], [1], [0, 0, 1, 1], [], []>} : vector<64x8xbf16>, vector<8x512xbf16>, vector<64x512xf32> -> vector<64x512xf32>
    %c0_3 = arith.constant 0 : index
    %c0_4 = arith.constant 0 : index
    %3 = vector.load %arg2[%c0_3, %c0_4] : memref<1x512xf32, #tpu.memory_space<vmem>>, vector<1x512xf32>
    %4 = vector.broadcast %3 : vector<1x512xf32> to vector<64x512xf32>
    %5 = arith.addf %2, %4 : vector<64x512xf32>
    %c0_5 = arith.constant 0 : index
    %c0_6 = arith.constant 0 : index
    %6 = vector.load %arg8[%c0_5, %c0_6] : memref<64x512xf32, #tpu.memory_space<vmem>>, vector<64x512xf32>
    tpu.vector_store %arg8[%c0_5, %c0_6], %5 {strides = array<i32>} : memref<64x512xf32, #tpu.memory_space<vmem>>, vector<64x512xf32>,
    %cst_7 = arith.constant 0.000000e+00 : f32
    %7 = vector.broadcast %cst_7 : f32 to vector<8x128xf32>
    %cst_8 = arith.constant 0.000000e+00 : f32
    %8 = vector.broadcast %cst_8 : f32 to vector<8x128xf32>
    %c0_9 = arith.constant 0 : index
    %c0_10 = arith.constant 0 : index
    %9 = vector.load %arg8[%c0_9, %c0_10] : memref<64x512xf32, #tpu.memory_space<vmem>>, vector<8x512xf32>
    %10 = arith.truncf %7 : vector<8x128xf32> to vector<8x128xbf16>
    %c0_11 = arith.constant 0 : index
    %c0_12 = arith.constant 0 : index
    %11 = vector.load %arg3[%c0_11, %c0_12] : memref<128x512xbf16, #tpu.memory_space<vmem>>, vector<128x512xbf16>
    %cst_13 = arith.constant dense<0.000000e+00> : vector<8x512xf32>
    %12 = tpu.matmul %10, %11, %cst_13 {dimension_numbers = #tpu.dot_dimension_numbers<[1], [0], [0], [1], [0, 0, 1, 1], [], []>} : vector<8x128xbf16>, vector<128x512xbf16>, vector<8x512xf32> -> vector<8x512xf32>
    %13 = arith.addf %9, %12 : vector<8x512xf32>
    %14 = vector.extract_strided_slice %13 {offsets = [0, 0], sizes = [8, 128], strides = [1, 1]} : vector<8x512xf32> to vector<8x128xf32>
    %15 = arith.negf %14 : vector<8x128xf32>
    %16 = math.exp %15 : vector<8x128xf32>
    %cst_14 = arith.constant 1.000000e+00 : f32
    %17 = vector.broadcast %cst_14 : f32 to vector<8x128xf32>
    %18 = arith.addf %17, %16 : vector<8x128xf32>
    %19 = arith.divf %17, %18 : vector<8x128xf32>
    %20 = vector.extract_strided_slice %13 {offsets = [0, 128], sizes = [8, 128], strides = [1, 1]} : vector<8x512xf32> to vector<8x128xf32>
    %21 = arith.negf %20 : vector<8x128xf32>
    %22 = math.exp %21 : vector<8x128xf32>
    %cst_15 = arith.constant 1.000000e+00 : f32
    %23 = vector.broadcast %cst_15 : f32 to vector<8x128xf32>
    %24 = arith.addf %23, %22 : vector<8x128xf32>
    %25 = arith.divf %23, %24 : vector<8x128xf32>
    %26 = vector.extract_strided_slice %13 {offsets = [0, 256], sizes = [8, 128], strides = [1, 1]} : vector<8x512xf32> to vector<8x128xf32>
    %27 = math.tanh %26 : vector<8x128xf32>
    %28 = vector.extract_strided_slice %13 {offsets = [0, 384], sizes = [8, 128], strides = [1, 1]} : vector<8x512xf32> to vector<8x128xf32>
    %29 = arith.negf %28 : vector<8x128xf32>
    %30 = math.exp %29 : vector<8x128xf32>
    %cst_16 = arith.constant 1.000000e+00 : f32
    %31 = vector.broadcast %cst_16 : f32 to vector<8x128xf32>
    %32 = arith.addf %31, %30 : vector<8x128xf32>
    %33 = arith.divf %31, %32 : vector<8x128xf32>
    %34 = arith.mulf %25, %8 : vector<8x128xf32>
    %35 = arith.mulf %19, %27 : vector<8x128xf32>
    %36 = arith.addf %34, %35 : vector<8x128xf32>
    %37 = math.tanh %36 : vector<8x128xf32>
    %38 = arith.mulf %33, %37 : vector<8x128xf32>
    %c8 = arith.constant 8 : index
    %c0_17 = arith.constant 0 : index
    %39 = vector.load %arg8[%c8, %c0_17] : memref<64x512xf32, #tpu.memory_space<vmem>>, vector<8x512xf32>
    %40 = arith.truncf %38 : vector<8x128xf32> to vector<8x128xbf16>
    %c0_18 = arith.constant 0 : index
    %c0_19 = arith.constant 0 : index
    %41 = vector.load %arg3[%c0_18, %c0_19] : memref<128x512xbf16, #tpu.memory_space<vmem>>, vector<128x512xbf16>
    %cst_20 = arith.constant dense<0.000000e+00> : vector<8x512xf32>
    %42 = tpu.matmul %40, %41, %cst_20 {dimension_numbers = #tpu.dot_dimension_numbers<[1], [0], [0], [1], [0, 0, 1, 1], [], []>} : vector<8x128xbf16>, vector<128x512xbf16>, vector<8x512xf32> -> vector<8x512xf32>
    %43 = arith.addf %39, %42 : vector<8x512xf32>
    %44 = vector.extract_strided_slice %43 {offsets = [0, 0], sizes = [8, 128], strides = [1, 1]} : vector<8x512xf32> to vector<8x128xf32>
    %45 = arith.negf %44 : vector<8x128xf32>
    %46 = math.exp %45 : vector<8x128xf32>
    %cst_21 = arith.constant 1.000000e+00 : f32
    %47 = vector.broadcast %cst_21 : f32 to vector<8x128xf32>
    %48 = arith.addf %47, %46 : vector<8x128xf32>
    %49 = arith.divf %47, %48 : vector<8x128xf32>
    %50 = vector.extract_strided_slice %43 {offsets = [0, 128], sizes = [8, 128], strides = [1, 1]} : vector<8x512xf32> to vector<8x128xf32>
    %51 = arith.negf %50 : vector<8x128xf32>
    %52 = math.exp %51 : vector<8x128xf32>
    %cst_22 = arith.constant 1.000000e+00 : f32
    %53 = vector.broadcast %cst_22 : f32 to vector<8x128xf32>
    %54 = arith.addf %53, %52 : vector<8x128xf32>
    %55 = arith.divf %53, %54 : vector<8x128xf32>
    %56 = vector.extract_strided_slice %43 {offsets = [0, 256], sizes = [8, 128], strides = [1, 1]} : vector<8x512xf32> to vector<8x128xf32>
    %57 = math.tanh %56 : vector<8x128xf32>
    %58 = vector.extract_strided_slice %43 {offsets = [0, 384], sizes = [8, 128], strides = [1, 1]} : vector<8x512xf32> to vector<8x128xf32>
    %59 = arith.negf %58 : vector<8x128xf32>
    %60 = math.exp %59 : vector<8x128xf32>
    %cst_23 = arith.constant 1.000000e+00 : f32
    %61 = vector.broadcast %cst_23 : f32 to vector<8x128xf32>
    %62 = arith.addf %61, %60 : vector<8x128xf32>
    %63 = arith.divf %61, %62 : vector<8x128xf32>
    %64 = arith.mulf %55, %36 : vector<8x128xf32>
    %65 = arith.mulf %49, %57 : vector<8x128xf32>
    %66 = arith.addf %64, %65 : vector<8x128xf32>
    %67 = math.tanh %66 : vector<8x128xf32>
    %68 = arith.mulf %63, %67 : vector<8x128xf32>
    %c16 = arith.constant 16 : index
    %c0_24 = arith.constant 0 : index
    %69 = vector.load %arg8[%c16, %c0_24] : memref<64x512xf32, #tpu.memory_space<vmem>>, vector<8x512xf32>
    %70 = arith.truncf %68 : vector<8x128xf32> to vector<8x128xbf16>
    %c0_25 = arith.constant 0 : index
    %c0_26 = arith.constant 0 : index
    %71 = vector.load %arg3[%c0_25, %c0_26] : memref<128x512xbf16, #tpu.memory_space<vmem>>, vector<128x512xbf16>
    %cst_27 = arith.constant dense<0.000000e+00> : vector<8x512xf32>
    %72 = tpu.matmul %70, %71, %cst_27 {dimension_numbers = #tpu.dot_dimension_numbers<[1], [0], [0], [1], [0, 0, 1, 1], [], []>} : vector<8x128xbf16>, vector<128x512xbf16>, vector<8x512xf32> -> vector<8x512xf32>
    %73 = arith.addf %69, %72 : vector<8x512xf32>
    %74 = vector.extract_strided_slice %73 {offsets = [0, 0], sizes = [8, 128], strides = [1, 1]} : vector<8x512xf32> to vector<8x128xf32>
    %75 = arith.negf %74 : vector<8x128xf32>
    %76 = math.exp %75 : vector<8x128xf32>
    %cst_28 = arith.constant 1.000000e+00 : f32
    %77 = vector.broadcast %cst_28 : f32 to vector<8x128xf32>
    %78 = arith.addf %77, %76 : vector<8x128xf32>
    %79 = arith.divf %77, %78 : vector<8x128xf32>
    %80 = vector.extract_strided_slice %73 {offsets = [0, 128], sizes = [8, 128], strides = [1, 1]} : vector<8x512xf32> to vector<8x128xf32>
    %81 = arith.negf %80 : vector<8x128xf32>
    %82 = math.exp %81 : vector<8x128xf32>
    %cst_29 = arith.constant 1.000000e+00 : f32
    %83 = vector.broadcast %cst_29 : f32 to vector<8x128xf32>
    %84 = arith.addf %83, %82 : vector<8x128xf32>
    %85 = arith.divf %83, %84 : vector<8x128xf32>
    %86 = vector.extract_strided_slice %73 {offsets = [0, 256], sizes = [8, 128], strides = [1, 1]} : vector<8x512xf32> to vector<8x128xf32>
    %87 = math.tanh %86 : vector<8x128xf32>
    %88 = vector.extract_strided_slice %73 {offsets = [0, 384], sizes = [8, 128], strides = [1, 1]} : vector<8x512xf32> to vector<8x128xf32>
    %89 = arith.negf %88 : vector<8x128xf32>
    %90 = math.exp %89 : vector<8x128xf32>
    %cst_30 = arith.constant 1.000000e+00 : f32
    %91 = vector.broadcast %cst_30 : f32 to vector<8x128xf32>
    %92 = arith.addf %91, %90 : vector<8x128xf32>
    %93 = arith.divf %91, %92 : vector<8x128xf32>
    %94 = arith.mulf %85, %66 : vector<8x128xf32>
    %95 = arith.mulf %79, %87 : vector<8x128xf32>
    %96 = arith.addf %94, %95 : vector<8x128xf32>
    %97 = math.tanh %96 : vector<8x128xf32>
    %98 = arith.mulf %93, %97 : vector<8x128xf32>
    %c24 = arith.constant 24 : index
    %c0_31 = arith.constant 0 : index
    %99 = vector.load %arg8[%c24, %c0_31] : memref<64x512xf32, #tpu.memory_space<vmem>>, vector<8x512xf32>
    %100 = arith.truncf %98 : vector<8x128xf32> to vector<8x128xbf16>
    %c0_32 = arith.constant 0 : index
    %c0_33 = arith.constant 0 : index
    %101 = vector.load %arg3[%c0_32, %c0_33] : memref<128x512xbf16, #tpu.memory_space<vmem>>, vector<128x512xbf16>
    %cst_34 = arith.constant dense<0.000000e+00> : vector<8x512xf32>
    %102 = tpu.matmul %100, %101, %cst_34 {dimension_numbers = #tpu.dot_dimension_numbers<[1], [0], [0], [1], [0, 0, 1, 1], [], []>} : vector<8x128xbf16>, vector<128x512xbf16>, vector<8x512xf32> -> vector<8x512xf32>
    %103 = arith.addf %99, %102 : vector<8x512xf32>
    %104 = vector.extract_strided_slice %103 {offsets = [0, 0], sizes = [8, 128], strides = [1, 1]} : vector<8x512xf32> to vector<8x128xf32>
    %105 = arith.negf %104 : vector<8x128xf32>
    %106 = math.exp %105 : vector<8x128xf32>
    %cst_35 = arith.constant 1.000000e+00 : f32
    %107 = vector.broadcast %cst_35 : f32 to vector<8x128xf32>
    %108 = arith.addf %107, %106 : vector<8x128xf32>
    %109 = arith.divf %107, %108 : vector<8x128xf32>
    %110 = vector.extract_strided_slice %103 {offsets = [0, 128], sizes = [8, 128], strides = [1, 1]} : vector<8x512xf32> to vector<8x128xf32>
    %111 = arith.negf %110 : vector<8x128xf32>
    %112 = math.exp %111 : vector<8x128xf32>
    %cst_36 = arith.constant 1.000000e+00 : f32
    %113 = vector.broadcast %cst_36 : f32 to vector<8x128xf32>
    %114 = arith.addf %113, %112 : vector<8x128xf32>
    %115 = arith.divf %113, %114 : vector<8x128xf32>
    %116 = vector.extract_strided_slice %103 {offsets = [0, 256], sizes = [8, 128], strides = [1, 1]} : vector<8x512xf32> to vector<8x128xf32>
    %117 = math.tanh %116 : vector<8x128xf32>
    %118 = vector.extract_strided_slice %103 {offsets = [0, 384], sizes = [8, 128], strides = [1, 1]} : vector<8x512xf32> to vector<8x128xf32>
    %119 = arith.negf %118 : vector<8x128xf32>
    %120 = math.exp %119 : vector<8x128xf32>
    %cst_37 = arith.constant 1.000000e+00 : f32
    %121 = vector.broadcast %cst_37 : f32 to vector<8x128xf32>
    %122 = arith.addf %121, %120 : vector<8x128xf32>
    %123 = arith.divf %121, %122 : vector<8x128xf32>
    %124 = arith.mulf %115, %96 : vector<8x128xf32>
    %125 = arith.mulf %109, %117 : vector<8x128xf32>
    %126 = arith.addf %124, %125 : vector<8x128xf32>
    %127 = math.tanh %126 : vector<8x128xf32>
    %128 = arith.mulf %123, %127 : vector<8x128xf32>
    %c32 = arith.constant 32 : index
    %c0_38 = arith.constant 0 : index
    %129 = vector.load %arg8[%c32, %c0_38] : memref<64x512xf32, #tpu.memory_space<vmem>>, vector<8x512xf32>
    %130 = arith.truncf %128 : vector<8x128xf32> to vector<8x128xbf16>
    %c0_39 = arith.constant 0 : index
    %c0_40 = arith.constant 0 : index
    %131 = vector.load %arg3[%c0_39, %c0_40] : memref<128x512xbf16, #tpu.memory_space<vmem>>, vector<128x512xbf16>
    %cst_41 = arith.constant dense<0.000000e+00> : vector<8x512xf32>
    %132 = tpu.matmul %130, %131, %cst_41 {dimension_numbers = #tpu.dot_dimension_numbers<[1], [0], [0], [1], [0, 0, 1, 1], [], []>} : vector<8x128xbf16>, vector<128x512xbf16>, vector<8x512xf32> -> vector<8x512xf32>
    %133 = arith.addf %129, %132 : vector<8x512xf32>
    %134 = vector.extract_strided_slice %133 {offsets = [0, 0], sizes = [8, 128], strides = [1, 1]} : vector<8x512xf32> to vector<8x128xf32>
    %135 = arith.negf %134 : vector<8x128xf32>
    %136 = math.exp %135 : vector<8x128xf32>
    %cst_42 = arith.constant 1.000000e+00 : f32
    %137 = vector.broadcast %cst_42 : f32 to vector<8x128xf32>
    %138 = arith.addf %137, %136 : vector<8x128xf32>
    %139 = arith.divf %137, %138 : vector<8x128xf32>
    %140 = vector.extract_strided_slice %133 {offsets = [0, 128], sizes = [8, 128], strides = [1, 1]} : vector<8x512xf32> to vector<8x128xf32>
    %141 = arith.negf %140 : vector<8x128xf32>
    %142 = math.exp %141 : vector<8x128xf32>
    %cst_43 = arith.constant 1.000000e+00 : f32
    %143 = vector.broadcast %cst_43 : f32 to vector<8x128xf32>
    %144 = arith.addf %143, %142 : vector<8x128xf32>
    %145 = arith.divf %143, %144 : vector<8x128xf32>
    %146 = vector.extract_strided_slice %133 {offsets = [0, 256], sizes = [8, 128], strides = [1, 1]} : vector<8x512xf32> to vector<8x128xf32>
    %147 = math.tanh %146 : vector<8x128xf32>
    %148 = vector.extract_strided_slice %133 {offsets = [0, 384], sizes = [8, 128], strides = [1, 1]} : vector<8x512xf32> to vector<8x128xf32>
    %149 = arith.negf %148 : vector<8x128xf32>
    %150 = math.exp %149 : vector<8x128xf32>
    %cst_44 = arith.constant 1.000000e+00 : f32
    %151 = vector.broadcast %cst_44 : f32 to vector<8x128xf32>
    %152 = arith.addf %151, %150 : vector<8x128xf32>
    %153 = arith.divf %151, %152 : vector<8x128xf32>
    %154 = arith.mulf %145, %126 : vector<8x128xf32>
    %155 = arith.mulf %139, %147 : vector<8x128xf32>
    %156 = arith.addf %154, %155 : vector<8x128xf32>
    %157 = math.tanh %156 : vector<8x128xf32>
    %158 = arith.mulf %153, %157 : vector<8x128xf32>
    %c40 = arith.constant 40 : index
    %c0_45 = arith.constant 0 : index
    %159 = vector.load %arg8[%c40, %c0_45] : memref<64x512xf32, #tpu.memory_space<vmem>>, vector<8x512xf32>
    %160 = arith.truncf %158 : vector<8x128xf32> to vector<8x128xbf16>
    %c0_46 = arith.constant 0 : index
    %c0_47 = arith.constant 0 : index
    %161 = vector.load %arg3[%c0_46, %c0_47] : memref<128x512xbf16, #tpu.memory_space<vmem>>, vector<128x512xbf16>
    %cst_48 = arith.constant dense<0.000000e+00> : vector<8x512xf32>
    %162 = tpu.matmul %160, %161, %cst_48 {dimension_numbers = #tpu.dot_dimension_numbers<[1], [0], [0], [1], [0, 0, 1, 1], [], []>} : vector<8x128xbf16>, vector<128x512xbf16>, vector<8x512xf32> -> vector<8x512xf32>
    %163 = arith.addf %159, %162 : vector<8x512xf32>
    %164 = vector.extract_strided_slice %163 {offsets = [0, 0], sizes = [8, 128], strides = [1, 1]} : vector<8x512xf32> to vector<8x128xf32>
    %165 = arith.negf %164 : vector<8x128xf32>
    %166 = math.exp %165 : vector<8x128xf32>
    %cst_49 = arith.constant 1.000000e+00 : f32
    %167 = vector.broadcast %cst_49 : f32 to vector<8x128xf32>
    %168 = arith.addf %167, %166 : vector<8x128xf32>
    %169 = arith.divf %167, %168 : vector<8x128xf32>
    %170 = vector.extract_strided_slice %163 {offsets = [0, 128], sizes = [8, 128], strides = [1, 1]} : vector<8x512xf32> to vector<8x128xf32>
    %171 = arith.negf %170 : vector<8x128xf32>
    %172 = math.exp %171 : vector<8x128xf32>
    %cst_50 = arith.constant 1.000000e+00 : f32
    %173 = vector.broadcast %cst_50 : f32 to vector<8x128xf32>
    %174 = arith.addf %173, %172 : vector<8x128xf32>
    %175 = arith.divf %173, %174 : vector<8x128xf32>
    %176 = vector.extract_strided_slice %163 {offsets = [0, 256], sizes = [8, 128], strides = [1, 1]} : vector<8x512xf32> to vector<8x128xf32>
    %177 = math.tanh %176 : vector<8x128xf32>
    %178 = vector.extract_strided_slice %163 {offsets = [0, 384], sizes = [8, 128], strides = [1, 1]} : vector<8x512xf32> to vector<8x128xf32>
    %179 = arith.negf %178 : vector<8x128xf32>
    %180 = math.exp %179 : vector<8x128xf32>
    %cst_51 = arith.constant 1.000000e+00 : f32
    %181 = vector.broadcast %cst_51 : f32 to vector<8x128xf32>
    %182 = arith.addf %181, %180 : vector<8x128xf32>
    %183 = arith.divf %181, %182 : vector<8x128xf32>
    %184 = arith.mulf %175, %156 : vector<8x128xf32>
    %185 = arith.mulf %169, %177 : vector<8x128xf32>
    %186 = arith.addf %184, %185 : vector<8x128xf32>
    %187 = math.tanh %186 : vector<8x128xf32>
    %188 = arith.mulf %183, %187 : vector<8x128xf32>
    %c48 = arith.constant 48 : index
    %c0_52 = arith.constant 0 : index
    %189 = vector.load %arg8[%c48, %c0_52] : memref<64x512xf32, #tpu.memory_space<vmem>>, vector<8x512xf32>
    %190 = arith.truncf %188 : vector<8x128xf32> to vector<8x128xbf16>
    %c0_53 = arith.constant 0 : index
    %c0_54 = arith.constant 0 : index
    %191 = vector.load %arg3[%c0_53, %c0_54] : memref<128x512xbf16, #tpu.memory_space<vmem>>, vector<128x512xbf16>
    %cst_55 = arith.constant dense<0.000000e+00> : vector<8x512xf32>
    %192 = tpu.matmul %190, %191, %cst_55 {dimension_numbers = #tpu.dot_dimension_numbers<[1], [0], [0], [1], [0, 0, 1, 1], [], []>} : vector<8x128xbf16>, vector<128x512xbf16>, vector<8x512xf32> -> vector<8x512xf32>
    %193 = arith.addf %189, %192 : vector<8x512xf32>
    %194 = vector.extract_strided_slice %193 {offsets = [0, 0], sizes = [8, 128], strides = [1, 1]} : vector<8x512xf32> to vector<8x128xf32>
    %195 = arith.negf %194 : vector<8x128xf32>
    %196 = math.exp %195 : vector<8x128xf32>
    %cst_56 = arith.constant 1.000000e+00 : f32
    %197 = vector.broadcast %cst_56 : f32 to vector<8x128xf32>
    %198 = arith.addf %197, %196 : vector<8x128xf32>
    %199 = arith.divf %197, %198 : vector<8x128xf32>
    %200 = vector.extract_strided_slice %193 {offsets = [0, 128], sizes = [8, 128], strides = [1, 1]} : vector<8x512xf32> to vector<8x128xf32>
    %201 = arith.negf %200 : vector<8x128xf32>
    %202 = math.exp %201 : vector<8x128xf32>
    %cst_57 = arith.constant 1.000000e+00 : f32
    %203 = vector.broadcast %cst_57 : f32 to vector<8x128xf32>
    %204 = arith.addf %203, %202 : vector<8x128xf32>
    %205 = arith.divf %203, %204 : vector<8x128xf32>
    %206 = vector.extract_strided_slice %193 {offsets = [0, 256], sizes = [8, 128], strides = [1, 1]} : vector<8x512xf32> to vector<8x128xf32>
    %207 = math.tanh %206 : vector<8x128xf32>
    %208 = vector.extract_strided_slice %193 {offsets = [0, 384], sizes = [8, 128], strides = [1, 1]} : vector<8x512xf32> to vector<8x128xf32>
    %209 = arith.negf %208 : vector<8x128xf32>
    %210 = math.exp %209 : vector<8x128xf32>
    %cst_58 = arith.constant 1.000000e+00 : f32
    %211 = vector.broadcast %cst_58 : f32 to vector<8x128xf32>
    %212 = arith.addf %211, %210 : vector<8x128xf32>
    %213 = arith.divf %211, %212 : vector<8x128xf32>
    %214 = arith.mulf %205, %186 : vector<8x128xf32>
    %215 = arith.mulf %199, %207 : vector<8x128xf32>
    %216 = arith.addf %214, %215 : vector<8x128xf32>
    %217 = math.tanh %216 : vector<8x128xf32>
    %218 = arith.mulf %213, %217 : vector<8x128xf32>
    %c56 = arith.constant 56 : index
    %c0_59 = arith.constant 0 : index
    %219 = vector.load %arg8[%c56, %c0_59] : memref<64x512xf32, #tpu.memory_space<vmem>>, vector<8x512xf32>
    %220 = arith.truncf %218 : vector<8x128xf32> to vector<8x128xbf16>
    %c0_60 = arith.constant 0 : index
    %c0_61 = arith.constant 0 : index
    %221 = vector.load %arg3[%c0_60, %c0_61] : memref<128x512xbf16, #tpu.memory_space<vmem>>, vector<128x512xbf16>
    %cst_62 = arith.constant dense<0.000000e+00> : vector<8x512xf32>
    %222 = tpu.matmul %220, %221, %cst_62 {dimension_numbers = #tpu.dot_dimension_numbers<[1], [0], [0], [1], [0, 0, 1, 1], [], []>} : vector<8x128xbf16>, vector<128x512xbf16>, vector<8x512xf32> -> vector<8x512xf32>
    %223 = arith.addf %219, %222 : vector<8x512xf32>
    %224 = vector.extract_strided_slice %223 {offsets = [0, 0], sizes = [8, 128], strides = [1, 1]} : vector<8x512xf32> to vector<8x128xf32>
    %225 = arith.negf %224 : vector<8x128xf32>
    %226 = math.exp %225 : vector<8x128xf32>
    %cst_63 = arith.constant 1.000000e+00 : f32
    %227 = vector.broadcast %cst_63 : f32 to vector<8x128xf32>
    %228 = arith.addf %227, %226 : vector<8x128xf32>
    %229 = arith.divf %227, %228 : vector<8x128xf32>
    %230 = vector.extract_strided_slice %223 {offsets = [0, 128], sizes = [8, 128], strides = [1, 1]} : vector<8x512xf32> to vector<8x128xf32>
    %231 = arith.negf %230 : vector<8x128xf32>
    %232 = math.exp %231 : vector<8x128xf32>
    %cst_64 = arith.constant 1.000000e+00 : f32
    %233 = vector.broadcast %cst_64 : f32 to vector<8x128xf32>
    %234 = arith.addf %233, %232 : vector<8x128xf32>
    %235 = arith.divf %233, %234 : vector<8x128xf32>
    %236 = vector.extract_strided_slice %223 {offsets = [0, 256], sizes = [8, 128], strides = [1, 1]} : vector<8x512xf32> to vector<8x128xf32>
    %237 = math.tanh %236 : vector<8x128xf32>
    %238 = vector.extract_strided_slice %223 {offsets = [0, 384], sizes = [8, 128], strides = [1, 1]} : vector<8x512xf32> to vector<8x128xf32>
    %239 = arith.negf %238 : vector<8x128xf32>
    %240 = math.exp %239 : vector<8x128xf32>
    %cst_65 = arith.constant 1.000000e+00 : f32
    %241 = vector.broadcast %cst_65 : f32 to vector<8x128xf32>
    %242 = arith.addf %241, %240 : vector<8x128xf32>
    %243 = arith.divf %241, %242 : vector<8x128xf32>
    %244 = arith.mulf %235, %216 : vector<8x128xf32>
    %245 = arith.mulf %229, %237 : vector<8x128xf32>
    %246 = arith.addf %244, %245 : vector<8x128xf32>
    %247 = math.tanh %246 : vector<8x128xf32>
    %248 = arith.mulf %243, %247 : vector<8x128xf32>
    %249 = arith.truncf %248 : vector<8x128xf32> to vector<8x128xbf16>
    %c0_66 = arith.constant 0 : index
    %c0_67 = arith.constant 0 : index
    %250 = vector.load %arg4[%c0_66, %c0_67] : memref<128x128xbf16, #tpu.memory_space<vmem>>, vector<128x128xbf16>
    %cst_68 = arith.constant dense<0.000000e+00> : vector<8x128xf32>
    %251 = tpu.matmul %249, %250, %cst_68 {dimension_numbers = #tpu.dot_dimension_numbers<[1], [0], [0], [1], [0, 0, 1, 1], [], []>} : vector<8x128xbf16>, vector<128x128xbf16>, vector<8x128xf32> -> vector<8x128xf32>
    %c0_69 = arith.constant 0 : index
    %c0_70 = arith.constant 0 : index
    %252 = vector.load %arg5[%c0_69, %c0_70] : memref<1x128xf32, #tpu.memory_space<vmem>>, vector<1x128xf32>
    %253 = vector.broadcast %252 : vector<1x128xf32> to vector<8x128xf32>
    %254 = arith.addf %251, %253 : vector<8x128xf32>
    %c0_71 = arith.constant 0 : index
    %c0_72 = arith.constant 0 : index
    %255 = vector.load %arg6[%c0_71, %c0_72] : memref<8x128xf32, #tpu.memory_space<vmem>>, vector<8x128xf32>
    %256 = arith.addf %254, %255 : vector<8x128xf32>
    %c0_73 = arith.constant 0 : index
    %c0_74 = arith.constant 0 : index
    %257 = vector.load %arg7[%c0_73, %c0_74] : memref<8x128xf32, #tpu.memory_space<vmem>>, vector<8x128xf32>
    tpu.vector_store %arg7[%c0_73, %c0_74], %256 {strides = array<i32>} : memref<8x128xf32, #tpu.memory_space<vmem>>, vector<8x128xf32>,
    return
  }
}

</mosaic_0001>

<llo_original>
// kernel: tpu_custom_call.1
$region0: #{tpu_custom_call.1}
  #allocation0 [shape = 'u32[]', space=smem, size = 0x4, offset = 0x4, fixed_abs, tag = 'smem constant byte address 0x4 - core index']
  #allocation1 [shape = 'u32[144,128]{1,0:T(1,128)}', space=vmem, size = 0x12000, scoped, tag = 'internal scratch']
  #allocation2 [shape = 'f32[64,512]{1,0:T(8,128)}', space=vmem, size = 0x20000, scoped, tag = 'scratch operand']
  %s0 = inlined_call_operand.vmem [shape: bf16[64,8], index: 0, kind: input, shape index: {}]
  %s1 = inlined_call_operand.vmem [shape: bf16[8,512], index: 1, kind: input, shape index: {}]
  %s2 = inlined_call_operand.vmem [shape: f32[1,512], index: 2, kind: input, shape index: {}]
  %s3 = inlined_call_operand.hbm [shape: bf16[128,512], index: 3, kind: input, shape index: {}]
  %s4 = inlined_call_operand.hbm [shape: bf16[128,128], index: 4, kind: input, shape index: {}]
  %s5 = inlined_call_operand.vmem [shape: f32[1,128], index: 5, kind: input, shape index: {}]
  %s6 = inlined_call_operand.vmem [shape: f32[8,128], index: 6, kind: input, shape index: {}]
  %s7 = inlined_call_operand.hbm [shape: f32[8,128], index: 7, kind: output, shape index: {}]
  %s8 = sld [smem:[#allocation0]]
  $region46: #{tpu_custom_call.1} parent=0
    _
  %s10 = ssub.s32 1, %s8
  %s11 = scalar_select 0, %s10, %s8
  $region1: #{tpu_custom_call.1} parent=0
    #allocation3 [shape = 'u8[131072]{0}', space=vmem, size = 0x20000, scoped, tag = 'input window, operand 3, single buffered']
    #allocation4 [shape = 's32[1]{0}', space=sflag, size = 0x4, scoped, tag = 'scoped memory for tpu_custom_call.1']
    #allocation5 [shape = 's32[1]{0}', space=sflag, size = 0x4, scoped, tag = 'scoped memory for tpu_custom_call.1']
    #allocation6 [shape = 'u8[32768]{0}', space=vmem, size = 0x8000, scoped, tag = 'input window, operand 4, single buffered']
    #allocation7 [shape = 's32[1]{0}', space=sflag, size = 0x4, scoped, tag = 'scoped memory for tpu_custom_call.1']
    #allocation8 [shape = 'u8[4096]{0}', space=vmem, size = 0x1000, scoped, tag = 'output window, operand 0, single buffered']
    %12 = vsyncpa [#allocation4], 0
    %13 = vsyncpa [#allocation7], 0
    %14 = vsyncpa [#allocation5], 0
    // Predicated region
    $region2: #{tpu_custom_call.1} parent=1 // pred_check
      _
    $region3: #{tpu_custom_call.1} parent=1 // pred_check_branch
      %16 = sbr.rel (0) target = $region5
    $region4: #{tpu_custom_call.1} parent=1 // pred_region
      _
    $region5: #{tpu_custom_call.1} parent=1 // pred_fallthru
      _
    // Predicated region
    $region6: #{tpu_custom_call.1} parent=1 // pred_check
      _
    $region7: #{tpu_custom_call.1} parent=1 // pred_check_branch
      %18 = sbr.rel (0) target = $region9
    $region8: #{tpu_custom_call.1} parent=1 // pred_region
      _
    $region9: #{tpu_custom_call.1} parent=1 // pred_fallthru
      _
    // Predicated region
    $region10: #{tpu_custom_call.1} parent=1 // pred_check
      _
    $region11: #{tpu_custom_call.1} parent=1 // pred_check_branch
      %20 = sbr.rel (0) target = $region13
    $region12: #{tpu_custom_call.1} parent=1 // pred_region
      _
    $region13: #{tpu_custom_call.1} parent=1 // pred_fallthru
      _
    // Predicated region
    $region14: #{tpu_custom_call.1} parent=1 // pred_check
      _
    $region15: #{tpu_custom_call.1} parent=1 // pred_check_branch
      %22 = sbr.rel (0) target = $region17
    $region16: #{tpu_custom_call.1} parent=1 // pred_region
      %s24 = ssub.s32 4096, 4096
      %25 = vsyncadd [#allocation4], %s24
      %s26 = sshll.u32 [#allocation3], 4
      %s27 = int_to_ptr.vmem [resolvable:$true] %s26
      %32 = dma.hbm_to_vmem [thread:$0]  %s3, 4096, %s27, [#allocation4], 256, 256, 16
    $region17: #{tpu_custom_call.1} parent=1 // pred_fallthru
      _
    // Predicated region
    $region18: #{tpu_custom_call.1} parent=1 // pred_check
      _
    $region19: #{tpu_custom_call.1} parent=1 // pred_check_branch
      %34 = sbr.rel (0) target = $region21
    $region20: #{tpu_custom_call.1} parent=1 // pred_region
      %s36 = ssub.s32 1024, 1024
      %37 = vsyncadd [#allocation7], %s36
      %s38 = sshll.u32 [#allocation6], 4
      %s39 = int_to_ptr.vmem [resolvable:$true] %s38
      %44 = dma.hbm_to_vmem [thread:$0]  %s4, 1024, %s39, [#allocation7], 64, 64, 4
    $region21: #{tpu_custom_call.1} parent=1 // pred_fallthru
      _
    // Predicated region
    $region22: #{tpu_custom_call.1} parent=1 // pred_check
      _
    $region23: #{tpu_custom_call.1} parent=1 // pred_check_branch
      %46 = sbr.rel (0) target = $region25
    $region24: #{tpu_custom_call.1} parent=1 // pred_region
      _
    $region25: #{tpu_custom_call.1} parent=1 // pred_fallthru
      _
    // Predicated region
    $region26: #{tpu_custom_call.1} parent=1 // pred_check
      _
    $region27: #{tpu_custom_call.1} parent=1 // pred_check_branch
      %48 = sbr.rel (0) target = $region29
    $region28: #{tpu_custom_call.1} parent=1 // pred_region
      _
    $region29: #{tpu_custom_call.1} parent=1 // pred_fallthru
      _
    // Predicated region
    $region30: #{tpu_custom_call.1} parent=1 // pred_check
      _
    $region31: #{tpu_custom_call.1} parent=1 // pred_check_branch
      %50 = sbr.rel (0) target = $region33
    $region32: #{tpu_custom_call.1} parent=1 // pred_region
      %51 = dma.done [#allocation4], 4096
    $region33: #{tpu_custom_call.1} parent=1 // pred_fallthru
      _
    // Predicated region
    $region34: #{tpu_custom_call.1} parent=1 // pred_check
      _
    $region35: #{tpu_custom_call.1} parent=1 // pred_check_branch
      %53 = sbr.rel (0) target = $region37
    $region36: #{tpu_custom_call.1} parent=1 // pred_region
      %54 = dma.done [#allocation7], 1024
    $region37: #{tpu_custom_call.1} parent=1 // pred_fallthru
      _
    %v56 = vld [vmem:[%s0] sm:$0xf]
    %v57 = vld [vmem:[%s0 + $0x4] sm:$0xf]
    %v58 = vld [vmem:[%s0 + $0x8] sm:$0xf]
    %v59 = vld [vmem:[%s0 + $0xc] sm:$0xf]
    %v60 = vld [vmem:[%s0 + $0x10] sm:$0xf]
    %v61 = vld [vmem:[%s0 + $0x14] sm:$0xf]
    %v62 = vld [vmem:[%s0 + $0x18] sm:$0xf]
    %v63 = vld [vmem:[%s0 + $0x1c] sm:$0xf]
    %v64 = vld [vmem:[%s1] sm:$0xff]
    %v65 = vld [vmem:[%s1 + $0x8] sm:$0xff]
    %v66 = vld [vmem:[%s2] sm:$0xf]
    %v68 = vlaneseq
    %v69 = vshrl.u32 %v68, 7
    %v70 = vsub.s32 0, %v69
    %v71 = vrot.slane %v66, %v70
    %v72 = vlaneseq
    %v73 = vshrl.u32 %v72, 7
    %v74 = vsub.s32 1, %v73
    %v75 = vrot.slane %v66, %v74
    %v76 = vlaneseq
    %v77 = vshrl.u32 %v76, 7
    %v78 = vsub.s32 2, %v77
    %v79 = vrot.slane %v66, %v78
    %v80 = vlaneseq
    %v81 = vshrl.u32 %v80, 7
    %v82 = vsub.s32 3, %v81
    %v83 = vrot.slane %v66, %v82
    %v96 = vunpack.c.l.b16 %v56
    %v97 = vunpack.c.l.b16 %v57
    %v98 = vunpack.c.l.b16 %v58
    %v99 = vunpack.c.l.b16 %v59
    %v100 = vunpack.c.l.b16 %v60
    %v101 = vunpack.c.l.b16 %v61
    %v102 = vunpack.c.l.b16 %v62
    %v103 = vunpack.c.l.b16 %v63
    %v104 = vpack.c.b16 %v97, %v96
    %v105 = vpack.c.b16 %v99, %v98
    %v106 = vpack.c.b16 %v101, %v100
    %v107 = vpack.c.b16 %v103, %v102
    %v110 = vunpack.c.l.b16 %v64
    %v111 = vunpack.c.h.b16 %v64
    %v112 = vunpack.c.l.b16 %v65
    %v113 = vunpack.c.h.b16 %v65
    %v114 = vpack.c.b16 %v110, %v110
    %v115 = vpack.c.b16 %v111, %v111
    %v116 = vpack.c.b16 %v112, %v112
    %v117 = vpack.c.b16 %v113, %v113
    %vm118 = vcmask 64512
    %v120 = vsel %vm118, %v104, 0
    %v123 = vsel %vm118, %v105, 0
    %v126 = vsel %vm118, %v106, 0
    %v129 = vsel %vm118, %v107, 0
    %vm131 = vcmask 1043456
    %v133 = vsel %vm131, %v114, 0
    %v136 = vsel %vm131, %v115, 0
    %v139 = vsel %vm131, %v116, 0
    %v142 = vsel %vm131, %v117, 0
    %144 = vmatprep.subr.bf16.mxu0 0
    %145 = vmatpush1.bf16.msra.mxu0 0
    %146 = vmatprep.subr.bf16.mxu0 0
    %147 = vmatpush1.bf16.msra.mxu0 0
    %148 = vmatprep.subr.bf16.mxu0 0
    %149 = vmatpush1.bf16.msra.mxu0 0
    %150 = vmatprep.subr.bf16.mxu0 0
    %151 = vmatpush1.bf16.msra.mxu0 0
    %152 = vmatprep.subr.bf16.mxu0 0
    %153 = vmatpush1.bf16.msra.mxu0 0
    %154 = vmatprep.subr.bf16.mxu0 0
    %155 = vmatpush1.bf16.msra.mxu0 0
    %156 = vmatprep.subr.bf16.mxu0 0
    %157 = vmatpush1.bf16.msra.mxu0 0
    %158 = vmatprep.subr.bf16.mxu0 %v136
    %159 = vmatpush1.bf16.msra.mxu0 %v133
    %160 = vmatprep.subr.bf16.mxu0 0
    %161 = vmatpush2.bf16.msra.mxu0 0
    %162 = vmatprep.subr.bf16.mxu0 0
    %163 = vmatpush2.bf16.msra.mxu0 0
    %164 = vmatprep.subr.bf16.mxu0 0
    %165 = vmatpush2.bf16.msra.mxu0 0
    %166 = vmatprep.subr.bf16.mxu0 0
    %167 = vmatpush2.bf16.msra.mxu0 0
    %168 = vmatprep.subr.bf16.mxu0 0
    %169 = vmatpush2.bf16.msra.mxu0 0
    %170 = vmatprep.subr.bf16.mxu0 0
    %171 = vmatpush2.bf16.msra.mxu0 0
    %172 = vmatprep.subr.bf16.mxu0 0
    %173 = vmatpush2.bf16.msra.mxu0 0
    %174 = vmatprep.subr.bf16.mxu0 0
    %175 = vmatpush2.bf16.msra.mxu0 0
    %176 = vmatprep.mubr.bf16.mxu0 0
    %177 = vmatmul.mubr.bf16.gmra.mxu0 %v120
    %v178 = vpop.f32.mrf.mxu0
    %v179 = vadd.f32 %v71, %v178
    %v180 = vpop.f32.mrf.mxu0
    %v181 = vadd.f32 %v75, %v180
    %v182 = vpop.f32.mrf.mxu0
    %v183 = vadd.f32 %v71, %v182
    %v184 = vpop.f32.mrf.mxu0
    %v185 = vadd.f32 %v75, %v184
    %186 = vmatprep.mubr.bf16.mxu0 0
    %187 = vmatmul.mubr.bf16.gmra.mxu0 %v123
    %v188 = vpop.f32.mrf.mxu0
    %v189 = vadd.f32 %v71, %v188
    %v190 = vpop.f32.mrf.mxu0
    %v191 = vadd.f32 %v75, %v190
    %v192 = vpop.f32.mrf.mxu0
    %v193 = vadd.f32 %v71, %v192
    %v194 = vpop.f32.mrf.mxu0
    %v195 = vadd.f32 %v75, %v194
    %196 = vmatprep.mubr.bf16.mxu0 0
    %197 = vmatmul.mubr.bf16.gmra.mxu0 %v126
    %v198 = vpop.f32.mrf.mxu0
    %v199 = vadd.f32 %v71, %v198
    %v200 = vpop.f32.mrf.mxu0
    %v201 = vadd.f32 %v75, %v200
    %v202 = vpop.f32.mrf.mxu0
    %v203 = vadd.f32 %v71, %v202
    %v204 = vpop.f32.mrf.mxu0
    %v205 = vadd.f32 %v75, %v204
    %206 = vmatprep.mubr.bf16.mxu0 0
    %207 = vmatmul.mubr.bf16.gmra.mxu0 %v129
    %v208 = vpop.f32.mrf.mxu0
    %v209 = vadd.f32 %v71, %v208
    %v210 = vpop.f32.mrf.mxu0
    %v211 = vadd.f32 %v75, %v210
    %v212 = vpop.f32.mrf.mxu0
    %v213 = vadd.f32 %v71, %v212
    %v214 = vpop.f32.mrf.mxu0
    %v215 = vadd.f32 %v75, %v214
    %216 = vdwg.mxu0
    %217 = vmatprep.subr.bf16.mxu0 0
    %218 = vmatpush1.bf16.msra.mxu0 0
    %219 = vmatprep.subr.bf16.mxu0 0
    %220 = vmatpush1.bf16.msra.mxu0 0
    %221 = vmatprep.subr.bf16.mxu0 0
    %222 = vmatpush1.bf16.msra.mxu0 0
    %223 = vmatprep.subr.bf16.mxu0 0
    %224 = vmatpush1.bf16.msra.mxu0 0
    %225 = vmatprep.subr.bf16.mxu0 0
    %226 = vmatpush1.bf16.msra.mxu0 0
    %227 = vmatprep.subr.bf16.mxu0 0
    %228 = vmatpush1.bf16.msra.mxu0 0
    %229 = vmatprep.subr.bf16.mxu0 0
    %230 = vmatpush1.bf16.msra.mxu0 0
    %231 = vmatprep.subr.bf16.mxu0 %v142
    %232 = vmatpush1.bf16.msra.mxu0 %v139
    %233 = vmatprep.subr.bf16.mxu0 0
    %234 = vmatpush2.bf16.msra.mxu0 0
    %235 = vmatprep.subr.bf16.mxu0 0
    %236 = vmatpush2.bf16.msra.mxu0 0
    %237 = vmatprep.subr.bf16.mxu0 0
    %238 = vmatpush2.bf16.msra.mxu0 0
    %239 = vmatprep.subr.bf16.mxu0 0
    %240 = vmatpush2.bf16.msra.mxu0 0
    %241 = vmatprep.subr.bf16.mxu0 0
    %242 = vmatpush2.bf16.msra.mxu0 0
    %243 = vmatprep.subr.bf16.mxu0 0
    %244 = vmatpush2.bf16.msra.mxu0 0
    %245 = vmatprep.subr.bf16.mxu0 0
    %246 = vmatpush2.bf16.msra.mxu0 0
    %247 = vmatprep.subr.bf16.mxu0 0
    %248 = vmatpush2.bf16.msra.mxu0 0
    %249 = vmatprep.mubr.bf16.mxu0 0
    %250 = vmatmul.mubr.bf16.gmra.mxu0 %v120
    %v251 = vpop.f32.mrf.mxu0
    %v252 = vadd.f32 %v79, %v251
    %v253 = vpop.f32.mrf.mxu0
    %v254 = vadd.f32 %v83, %v253
    %v255 = vpop.f32.mrf.mxu0
    %v256 = vadd.f32 %v79, %v255
    %v257 = vpop.f32.mrf.mxu0
    %v258 = vadd.f32 %v83, %v257
    %259 = vmatprep.mubr.bf16.mxu0 0
    %260 = vmatmul.mubr.bf16.gmra.mxu0 %v123
    %v261 = vpop.f32.mrf.mxu0
    %v262 = vadd.f32 %v79, %v261
    %v263 = vpop.f32.mrf.mxu0
    %v264 = vadd.f32 %v83, %v263
    %v265 = vpop.f32.mrf.mxu0
    %v266 = vadd.f32 %v79, %v265
    %v267 = vpop.f32.mrf.mxu0
    %v268 = vadd.f32 %v83, %v267
    %269 = vmatprep.mubr.bf16.mxu0 0
    %270 = vmatmul.mubr.bf16.gmra.mxu0 %v126
    %v271 = vpop.f32.mrf.mxu0
    %v272 = vadd.f32 %v79, %v271
    %v273 = vpop.f32.mrf.mxu0
    %v274 = vadd.f32 %v83, %v273
    %v275 = vpop.f32.mrf.mxu0
    %v276 = vadd.f32 %v79, %v275
    %v277 = vpop.f32.mrf.mxu0
    %v278 = vadd.f32 %v83, %v277
    %279 = vmatprep.mubr.bf16.mxu0 0
    %280 = vmatmul.mubr.bf16.gmra.mxu0 %v129
    %v281 = vpop.f32.mrf.mxu0
    %v282 = vadd.f32 %v79, %v281
    %v283 = vpop.f32.mrf.mxu0
    %v284 = vadd.f32 %v83, %v283
    %v285 = vpop.f32.mrf.mxu0
    %v286 = vadd.f32 %v79, %v285
    %v287 = vpop.f32.mrf.mxu0
    %v288 = vadd.f32 %v83, %v287
    %289 = vdwg.mxu0
    %290 = vst [vmem:[#allocation2] sm:$0xff] %v179
    %291 = vst [vmem:[#allocation2 + $0x8] sm:$0xff] %v181
    %292 = vst [vmem:[#allocation2 + $0x10] sm:$0xff] %v252
    %293 = vst [vmem:[#allocation2 + $0x18] sm:$0xff] %v254
    %294 = vst [vmem:[#allocation2 + $0x20] sm:$0xff] %v183
    %295 = vst [vmem:[#allocation2 + $0x28] sm:$0xff] %v185
    %296 = vst [vmem:[#allocation2 + $0x30] sm:$0xff] %v256
    %297 = vst [vmem:[#allocation2 + $0x38] sm:$0xff] %v258
    %298 = vst [vmem:[#allocation2 + $0x40] sm:$0xff] %v189
    %299 = vst [vmem:[#allocation2 + $0x48] sm:$0xff] %v191
    %300 = vst [vmem:[#allocation2 + $0x50] sm:$0xff] %v262
    %301 = vst [vmem:[#allocation2 + $0x58] sm:$0xff] %v264
    %302 = vst [vmem:[#allocation2 + $0x60] sm:$0xff] %v193
    %303 = vst [vmem:[#allocation2 + $0x68] sm:$0xff] %v195
    %304 = vst [vmem:[#allocation2 + $0x70] sm:$0xff] %v266
    %305 = vst [vmem:[#allocation2 + $0x78] sm:$0xff] %v268
    %306 = vst [vmem:[#allocation2 + $0x80] sm:$0xff] %v199
    %307 = vst [vmem:[#allocation2 + $0x88] sm:$0xff] %v201
    %308 = vst [vmem:[#allocation2 + $0x90] sm:$0xff] %v272
    %309 = vst [vmem:[#allocation2 + $0x98] sm:$0xff] %v274
    %310 = vst [vmem:[#allocation2 + $0xa0] sm:$0xff] %v203
    %311 = vst [vmem:[#allocation2 + $0xa8] sm:$0xff] %v205
    %312 = vst [vmem:[#allocation2 + $0xb0] sm:$0xff] %v276
    %313 = vst [vmem:[#allocation2 + $0xb8] sm:$0xff] %v278
    %314 = vst [vmem:[#allocation2 + $0xc0] sm:$0xff] %v209
    %315 = vst [vmem:[#allocation2 + $0xc8] sm:$0xff] %v211
    %316 = vst [vmem:[#allocation2 + $0xd0] sm:$0xff] %v282
    %317 = vst [vmem:[#allocation2 + $0xd8] sm:$0xff] %v284
    %318 = vst [vmem:[#allocation2 + $0xe0] sm:$0xff] %v213
    %319 = vst [vmem:[#allocation2 + $0xe8] sm:$0xff] %v215
    %320 = vst [vmem:[#allocation2 + $0xf0] sm:$0xff] %v286
    %321 = vst [vmem:[#allocation2 + $0xf8] sm:$0xff] %v288
    %v322 = vld [vmem:[#allocation2] sm:$0xff]
    %v323 = vld [vmem:[#allocation2 + $0x8] sm:$0xff]
    %v324 = vld [vmem:[#allocation2 + $0x10] sm:$0xff]
    %v325 = vld [vmem:[#allocation2 + $0x18] sm:$0xff]
    %v326 = vld [vmem:[#allocation3] sm:$0xff]
    %v327 = vld [vmem:[#allocation3 + $0x8] sm:$0xff]
    %v328 = vld [vmem:[#allocation3 + $0x10] sm:$0xff]
    %v329 = vld [vmem:[#allocation3 + $0x18] sm:$0xff]
    %v330 = vld [vmem:[#allocation3 + $0x20] sm:$0xff]
    %v331 = vld [vmem:[#allocation3 + $0x28] sm:$0xff]
    %v332 = vld [vmem:[#allocation3 + $0x30] sm:$0xff]
    %v333 = vld [vmem:[#allocation3 + $0x38] sm:$0xff]
    %v334 = vld [vmem:[#allocation3 + $0x40] sm:$0xff]
    %v335 = vld [vmem:[#allocation3 + $0x48] sm:$0xff]
    %v336 = vld [vmem:[#allocation3 + $0x50] sm:$0xff]
    %v337 = vld [vmem:[#allocation3 + $0x58] sm:$0xff]
    %v338 = vld [vmem:[#allocation3 + $0x60] sm:$0xff]
    %v339 = vld [vmem:[#allocation3 + $0x68] sm:$0xff]
    %v340 = vld [vmem:[#allocation3 + $0x70] sm:$0xff]
    %v341 = vld [vmem:[#allocation3 + $0x78] sm:$0xff]
    %v342 = vld [vmem:[#allocation3 + $0x80] sm:$0xff]
    %v343 = vld [vmem:[#allocation3 + $0x88] sm:$0xff]
    %v344 = vld [vmem:[#allocation3 + $0x90] sm:$0xff]
    %v345 = vld [vmem:[#allocation3 + $0x98] sm:$0xff]
    %v346 = vld [vmem:[#allocation3 + $0xa0] sm:$0xff]
    %v347 = vld [vmem:[#allocation3 + $0xa8] sm:$0xff]
    %v348 = vld [vmem:[#allocation3 + $0xb0] sm:$0xff]
    %v349 = vld [vmem:[#allocation3 + $0xb8] sm:$0xff]
    %v350 = vld [vmem:[#allocation3 + $0xc0] sm:$0xff]
    %v351 = vld [vmem:[#allocation3 + $0xc8] sm:$0xff]
    %v352 = vld [vmem:[#allocation3 + $0xd0] sm:$0xff]
    %v353 = vld [vmem:[#allocation3 + $0xd8] sm:$0xff]
    %v354 = vld [vmem:[#allocation3 + $0xe0] sm:$0xff]
    %v355 = vld [vmem:[#allocation3 + $0xe8] sm:$0xff]
    %v356 = vld [vmem:[#allocation3 + $0xf0] sm:$0xff]
    %v357 = vld [vmem:[#allocation3 + $0xf8] sm:$0xff]
    %v390 = vunpack.c.l.b16 %v326
    %v391 = vunpack.c.h.b16 %v326
    %v392 = vunpack.c.l.b16 %v327
    %v393 = vunpack.c.h.b16 %v327
    %v394 = vunpack.c.l.b16 %v328
    %v395 = vunpack.c.h.b16 %v328
    %v396 = vunpack.c.l.b16 %v329
    %v397 = vunpack.c.h.b16 %v329
    %v398 = vunpack.c.l.b16 %v330
    %v399 = vunpack.c.h.b16 %v330
    %v400 = vunpack.c.l.b16 %v331
    %v401 = vunpack.c.h.b16 %v331
    %v402 = vunpack.c.l.b16 %v332
    %v403 = vunpack.c.h.b16 %v332
    %v404 = vunpack.c.l.b16 %v333
    %v405 = vunpack.c.h.b16 %v333
    %v406 = vunpack.c.l.b16 %v334
    %v407 = vunpack.c.h.b16 %v334
    %v408 = vunpack.c.l.b16 %v335
    %v409 = vunpack.c.h.b16 %v335
    %v410 = vunpack.c.l.b16 %v336
    %v411 = vunpack.c.h.b16 %v336
    %v412 = vunpack.c.l.b16 %v337
    %v413 = vunpack.c.h.b16 %v337
    %v414 = vunpack.c.l.b16 %v338
    %v415 = vunpack.c.h.b16 %v338
    %v416 = vunpack.c.l.b16 %v339
    %v417 = vunpack.c.h.b16 %v339
    %v418 = vunpack.c.l.b16 %v340
    %v419 = vunpack.c.h.b16 %v340
    %v420 = vunpack.c.l.b16 %v341
    %v421 = vunpack.c.h.b16 %v341
    %v422 = vunpack.c.l.b16 %v342
    %v423 = vunpack.c.h.b16 %v342
    %v424 = vunpack.c.l.b16 %v343
    %v425 = vunpack.c.h.b16 %v343
    %v426 = vunpack.c.l.b16 %v344
    %v427 = vunpack.c.h.b16 %v344
    %v428 = vunpack.c.l.b16 %v345
    %v429 = vunpack.c.h.b16 %v345
    %v430 = vunpack.c.l.b16 %v346
    %v431 = vunpack.c.h.b16 %v346
    %v432 = vunpack.c.l.b16 %v347
    %v433 = vunpack.c.h.b16 %v347
    %v434 = vunpack.c.l.b16 %v348
    %v435 = vunpack.c.h.b16 %v348
    %v436 = vunpack.c.l.b16 %v349
    %v437 = vunpack.c.h.b16 %v349
    %v438 = vunpack.c.l.b16 %v350
    %v439 = vunpack.c.h.b16 %v350
    %v440 = vunpack.c.l.b16 %v351
    %v441 = vunpack.c.h.b16 %v351
    %v442 = vunpack.c.l.b16 %v352
    %v443 = vunpack.c.h.b16 %v352
    %v444 = vunpack.c.l.b16 %v353
    %v445 = vunpack.c.h.b16 %v353
    %v446 = vunpack.c.l.b16 %v354
    %v447 = vunpack.c.h.b16 %v354
    %v448 = vunpack.c.l.b16 %v355
    %v449 = vunpack.c.h.b16 %v355
    %v450 = vunpack.c.l.b16 %v356
    %v451 = vunpack.c.h.b16 %v356
    %v452 = vunpack.c.l.b16 %v357
    %v453 = vunpack.c.h.b16 %v357
    %v454 = vpack.c.b16 %v394, %v390
    %v455 = vpack.c.b16 %v395, %v391
    %v456 = vpack.c.b16 %v396, %v392
    %v457 = vpack.c.b16 %v397, %v393
    %v458 = vpack.c.b16 %v402, %v398
    %v459 = vpack.c.b16 %v403, %v399
    %v460 = vpack.c.b16 %v404, %v400
    %v461 = vpack.c.b16 %v405, %v401
    %v462 = vpack.c.b16 %v410, %v406
    %v463 = vpack.c.b16 %v411, %v407
    %v464 = vpack.c.b16 %v412, %v408
    %v465 = vpack.c.b16 %v413, %v409
    %v466 = vpack.c.b16 %v418, %v414
    %v467 = vpack.c.b16 %v419, %v415
    %v468 = vpack.c.b16 %v420, %v416
    %v469 = vpack.c.b16 %v421, %v417
    %v470 = vpack.c.b16 %v426, %v422
    %v471 = vpack.c.b16 %v427, %v423
    %v472 = vpack.c.b16 %v428, %v424
    %v473 = vpack.c.b16 %v429, %v425
    %v474 = vpack.c.b16 %v434, %v430
    %v475 = vpack.c.b16 %v435, %v431
    %v476 = vpack.c.b16 %v436, %v432
    %v477 = vpack.c.b16 %v437, %v433
    %v478 = vpack.c.b16 %v442, %v438
    %v479 = vpack.c.b16 %v443, %v439
    %v480 = vpack.c.b16 %v444, %v440
    %v481 = vpack.c.b16 %v445, %v441
    %v482 = vpack.c.b16 %v450, %v446
    %v483 = vpack.c.b16 %v451, %v447
    %v484 = vpack.c.b16 %v452, %v448
    %v485 = vpack.c.b16 %v453, %v449
    %518 = vmatprep.subr.bf16.mxu0 %v483
    %519 = vmatpush1.bf16.msra.mxu0 %v482
    %520 = vmatprep.subr.bf16.mxu0 %v479
    %521 = vmatpush1.bf16.msra.mxu0 %v478
    %522 = vmatprep.subr.bf16.mxu0 %v475
    %523 = vmatpush1.bf16.msra.mxu0 %v474
    %524 = vmatprep.subr.bf16.mxu0 %v471
    %525 = vmatpush1.bf16.msra.mxu0 %v470
    %526 = vmatprep.subr.bf16.mxu0 %v467
    %527 = vmatpush1.bf16.msra.mxu0 %v466
    %528 = vmatprep.subr.bf16.mxu0 %v463
    %529 = vmatpush1.bf16.msra.mxu0 %v462
    %530 = vmatprep.subr.bf16.mxu0 %v459
    %531 = vmatpush1.bf16.msra.mxu0 %v458
    %532 = vmatprep.subr.bf16.mxu0 %v455
    %533 = vmatpush1.bf16.msra.mxu0 %v454
    %534 = vmatprep.subr.bf16.mxu0 0
    %535 = vmatpush2.bf16.msra.mxu0 0
    %536 = vmatprep.subr.bf16.mxu0 0
    %537 = vmatpush2.bf16.msra.mxu0 0
    %538 = vmatprep.subr.bf16.mxu0 0
    %539 = vmatpush2.bf16.msra.mxu0 0
    %540 = vmatprep.subr.bf16.mxu0 0
    %541 = vmatpush2.bf16.msra.mxu0 0
    %542 = vmatprep.subr.bf16.mxu0 0
    %543 = vmatpush2.bf16.msra.mxu0 0
    %544 = vmatprep.subr.bf16.mxu0 0
    %545 = vmatpush2.bf16.msra.mxu0 0
    %546 = vmatprep.subr.bf16.mxu0 0
    %547 = vmatpush2.bf16.msra.mxu0 0
    %548 = vmatprep.subr.bf16.mxu0 0
    %549 = vmatpush2.bf16.msra.mxu0 0
    %550 = vmatprep.mubr.bf16.mxu0 0
    %551 = vmatmul.mubr.bf16.gmra.mxu0 0
    %v552 = vpop.f32.mrf.mxu0
    %v553 = vadd.f32 0.0, %v552
    %v554 = vpop.f32.mrf.mxu0
    %v555 = vadd.f32 0.0, %v554
    %v556 = vpop.f32.mrf.mxu0
    %v557 = vpop.f32.mrf.mxu0
    %558 = vdwg.mxu0
    %559 = vmatprep.subr.bf16.mxu0 %v485
    %560 = vmatpush1.bf16.msra.mxu0 %v484
    %561 = vmatprep.subr.bf16.mxu0 %v481
    %562 = vmatpush1.bf16.msra.mxu0 %v480
    %563 = vmatprep.subr.bf16.mxu0 %v477
    %564 = vmatpush1.bf16.msra.mxu0 %v476
    %565 = vmatprep.subr.bf16.mxu0 %v473
    %566 = vmatpush1.bf16.msra.mxu0 %v472
    %567 = vmatprep.subr.bf16.mxu0 %v469
    %568 = vmatpush1.bf16.msra.mxu0 %v468
    %569 = vmatprep.subr.bf16.mxu0 %v465
    %570 = vmatpush1.bf16.msra.mxu0 %v464
    %571 = vmatprep.subr.bf16.mxu0 %v461
    %572 = vmatpush1.bf16.msra.mxu0 %v460
    %573 = vmatprep.subr.bf16.mxu0 %v457
    %574 = vmatpush1.bf16.msra.mxu0 %v456
    %575 = vmatprep.subr.bf16.mxu0 0
    %576 = vmatpush2.bf16.msra.mxu0 0
    %577 = vmatprep.subr.bf16.mxu0 0
    %578 = vmatpush2.bf16.msra.mxu0 0
    %579 = vmatprep.subr.bf16.mxu0 0
    %580 = vmatpush2.bf16.msra.mxu0 0
    %581 = vmatprep.subr.bf16.mxu0 0
    %582 = vmatpush2.bf16.msra.mxu0 0
    %583 = vmatprep.subr.bf16.mxu0 0
    %584 = vmatpush2.bf16.msra.mxu0 0
    %585 = vmatprep.subr.bf16.mxu0 0
    %586 = vmatpush2.bf16.msra.mxu0 0
    %587 = vmatprep.subr.bf16.mxu0 0
    %588 = vmatpush2.bf16.msra.mxu0 0
    %589 = vmatprep.subr.bf16.mxu0 0
    %590 = vmatpush2.bf16.msra.mxu0 0
    %591 = vmatprep.mubr.bf16.mxu0 0
    %592 = vmatmul.mubr.bf16.gmra.mxu0 0
    %v593 = vpop.f32.mrf.mxu0
    %v594 = vadd.f32 0.0, %v593
    %v595 = vpop.f32.mrf.mxu0
    %v596 = vadd.f32 0.0, %v595
    %v597 = vpop.f32.mrf.mxu0
    %v598 = vpop.f32.mrf.mxu0
    %599 = vdwg.mxu0
    %v600 = vadd.f32 %v322, %v553
    %v601 = vadd.f32 %v323, %v555
    %v602 = vadd.f32 %v324, %v594
    %v603 = vadd.f32 %v325, %v596
    %v604 = vxor.u32 %v600, 2147483648
    %v605 = vmul.f32 %v604, 1.442695
    %v606 = vpow.pop %v605
    %v607 = vadd.f32 %v606, 1.0
    %v608 = vrcp.pop %v607
    %v609 = vmul.f32 1.0, %v608
    %v610 = vxor.u32 %v601, 2147483648
    %v611 = vmul.f32 %v610, 1.442695
    %v612 = vpow.pop %v611
    %v613 = vadd.f32 %v612, 1.0
    %v614 = vrcp.pop %v613
    %v615 = vmul.f32 1.0, %v614
    %v616 = vtanh.pop %v602
    %v617 = vxor.u32 %v603, 2147483648
    %v618 = vmul.f32 %v617, 1.442695
    %v619 = vpow.pop %v618
    %v620 = vadd.f32 %v619, 1.0
    %v621 = vrcp.pop %v620
    %v622 = vmul.f32 1.0, %v621
    %v623 = vmul.f32 %v615, 0.0
    %v624 = vmul.f32 %v609, %v616
    %v625 = vadd.f32 %v623, %v624
    %v626 = vtanh.pop %v625
    %v627 = vmul.f32 %v622, %v626
    %v628 = vld [vmem:[#allocation2 + $0x20] sm:$0xff]
    %v629 = vld [vmem:[#allocation2 + $0x28] sm:$0xff]
    %v630 = vld [vmem:[#allocation2 + $0x30] sm:$0xff]
    %v631 = vld [vmem:[#allocation2 + $0x38] sm:$0xff]
    %v632 = vpack.c.bf16 %v627, %v627
    %633 = vmatprep.subr.bf16.mxu0 %v483
    %634 = vmatpush1.bf16.msra.mxu0 %v482
    %635 = vmatprep.subr.bf16.mxu0 %v479
    %636 = vmatpush1.bf16.msra.mxu0 %v478
    %637 = vmatprep.subr.bf16.mxu0 %v475
    %638 = vmatpush1.bf16.msra.mxu0 %v474
    %639 = vmatprep.subr.bf16.mxu0 %v471
    %640 = vmatpush1.bf16.msra.mxu0 %v470
    %641 = vmatprep.subr.bf16.mxu0 %v467
    %642 = vmatpush1.bf16.msra.mxu0 %v466
    %643 = vmatprep.subr.bf16.mxu0 %v463
    %644 = vmatpush1.bf16.msra.mxu0 %v462
    %645 = vmatprep.subr.bf16.mxu0 %v459
    %646 = vmatpush1.bf16.msra.mxu0 %v458
    %647 = vmatprep.subr.bf16.mxu0 %v455
    %648 = vmatpush1.bf16.msra.mxu0 %v454
    %649 = vmatprep.subr.bf16.mxu0 0
    %650 = vmatpush2.bf16.msra.mxu0 0
    %651 = vmatprep.subr.bf16.mxu0 0
    %652 = vmatpush2.bf16.msra.mxu0 0
    %653 = vmatprep.subr.bf16.mxu0 0
    %654 = vmatpush2.bf16.msra.mxu0 0
    %655 = vmatprep.subr.bf16.mxu0 0
    %656 = vmatpush2.bf16.msra.mxu0 0
    %657 = vmatprep.subr.bf16.mxu0 0
    %658 = vmatpush2.bf16.msra.mxu0 0
    %659 = vmatprep.subr.bf16.mxu0 0
    %660 = vmatpush2.bf16.msra.mxu0 0
    %661 = vmatprep.subr.bf16.mxu0 0
    %662 = vmatpush2.bf16.msra.mxu0 0
    %663 = vmatprep.subr.bf16.mxu0 0
    %664 = vmatpush2.bf16.msra.mxu0 0
    %665 = vmatprep.mubr.bf16.mxu0 0
    %666 = vmatmul.mubr.bf16.gmra.mxu0 %v632
    %v667 = vpop.f32.mrf.mxu0
    %v668 = vadd.f32 0.0, %v667
    %v669 = vpop.f32.mrf.mxu0
    %v670 = vadd.f32 0.0, %v669
    %v671 = vpop.f32.mrf.mxu0
    %v672 = vpop.f32.mrf.mxu0
    %673 = vdwg.mxu0
    %674 = vmatprep.subr.bf16.mxu0 %v485
    %675 = vmatpush1.bf16.msra.mxu0 %v484
    %676 = vmatprep.subr.bf16.mxu0 %v481
    %677 = vmatpush1.bf16.msra.mxu0 %v480
    %678 = vmatprep.subr.bf16.mxu0 %v477
    %679 = vmatpush1.bf16.msra.mxu0 %v476
    %680 = vmatprep.subr.bf16.mxu0 %v473
    %681 = vmatpush1.bf16.msra.mxu0 %v472
    %682 = vmatprep.subr.bf16.mxu0 %v469
    %683 = vmatpush1.bf16.msra.mxu0 %v468
    %684 = vmatprep.subr.bf16.mxu0 %v465
    %685 = vmatpush1.bf16.msra.mxu0 %v464
    %686 = vmatprep.subr.bf16.mxu0 %v461
    %687 = vmatpush1.bf16.msra.mxu0 %v460
    %688 = vmatprep.subr.bf16.mxu0 %v457
    %689 = vmatpush1.bf16.msra.mxu0 %v456
    %690 = vmatprep.subr.bf16.mxu0 0
    %691 = vmatpush2.bf16.msra.mxu0 0
    %692 = vmatprep.subr.bf16.mxu0 0
    %693 = vmatpush2.bf16.msra.mxu0 0
    %694 = vmatprep.subr.bf16.mxu0 0
    %695 = vmatpush2.bf16.msra.mxu0 0
    %696 = vmatprep.subr.bf16.mxu0 0
    %697 = vmatpush2.bf16.msra.mxu0 0
    %698 = vmatprep.subr.bf16.mxu0 0
    %699 = vmatpush2.bf16.msra.mxu0 0
    %700 = vmatprep.subr.bf16.mxu0 0
    %701 = vmatpush2.bf16.msra.mxu0 0
    %702 = vmatprep.subr.bf16.mxu0 0
    %703 = vmatpush2.bf16.msra.mxu0 0
    %704 = vmatprep.subr.bf16.mxu0 0
    %705 = vmatpush2.bf16.msra.mxu0 0
    %706 = vmatprep.mubr.bf16.mxu0 0
    %707 = vmatmul.mubr.bf16.gmra.mxu0 %v632
    %v708 = vpop.f32.mrf.mxu0
    %v709 = vadd.f32 0.0, %v708
    %v710 = vpop.f32.mrf.mxu0
    %v711 = vadd.f32 0.0, %v710
    %v712 = vpop.f32.mrf.mxu0
    %v713 = vpop.f32.mrf.mxu0
    %714 = vdwg.mxu0
    %v715 = vadd.f32 %v628, %v668
    %v716 = vadd.f32 %v629, %v670
    %v717 = vadd.f32 %v630, %v709
    %v718 = vadd.f32 %v631, %v711
    %v719 = vxor.u32 %v715, 2147483648
    %v720 = vmul.f32 %v719, 1.442695
    %v721 = vpow.pop %v720
    %v722 = vadd.f32 %v721, 1.0
    %v723 = vrcp.pop %v722
    %v724 = vmul.f32 1.0, %v723
    %v725 = vxor.u32 %v716, 2147483648
    %v726 = vmul.f32 %v725, 1.442695
    %v727 = vpow.pop %v726
    %v728 = vadd.f32 %v727, 1.0
    %v729 = vrcp.pop %v728
    %v730 = vmul.f32 1.0, %v729
    %v731 = vtanh.pop %v717
    %v732 = vxor.u32 %v718, 2147483648
    %v733 = vmul.f32 %v732, 1.442695
    %v734 = vpow.pop %v733
    %v735 = vadd.f32 %v734, 1.0
    %v736 = vrcp.pop %v735
    %v737 = vmul.f32 1.0, %v736
    %v738 = vmul.f32 %v730, %v625
    %v739 = vmul.f32 %v724, %v731
    %v740 = vadd.f32 %v738, %v739
    %v741 = vtanh.pop %v740
    %v742 = vmul.f32 %v737, %v741
    %v743 = vld [vmem:[#allocation2 + $0x40] sm:$0xff]
    %v744 = vld [vmem:[#allocation2 + $0x48] sm:$0xff]
    %v745 = vld [vmem:[#allocation2 + $0x50] sm:$0xff]
    %v746 = vld [vmem:[#allocation2 + $0x58] sm:$0xff]
    %v747 = vpack.c.bf16 %v742, %v742
    %748 = vmatprep.subr.bf16.mxu0 %v483
    %749 = vmatpush1.bf16.msra.mxu0 %v482
    %750 = vmatprep.subr.bf16.mxu0 %v479
    %751 = vmatpush1.bf16.msra.mxu0 %v478
    %752 = vmatprep.subr.bf16.mxu0 %v475
    %753 = vmatpush1.bf16.msra.mxu0 %v474
    %754 = vmatprep.subr.bf16.mxu0 %v471
    %755 = vmatpush1.bf16.msra.mxu0 %v470
    %756 = vmatprep.subr.bf16.mxu0 %v467
    %757 = vmatpush1.bf16.msra.mxu0 %v466
    %758 = vmatprep.subr.bf16.mxu0 %v463
    %759 = vmatpush1.bf16.msra.mxu0 %v462
    %760 = vmatprep.subr.bf16.mxu0 %v459
    %761 = vmatpush1.bf16.msra.mxu0 %v458
    %762 = vmatprep.subr.bf16.mxu0 %v455
    %763 = vmatpush1.bf16.msra.mxu0 %v454
    %764 = vmatprep.subr.bf16.mxu0 0
    %765 = vmatpush2.bf16.msra.mxu0 0
    %766 = vmatprep.subr.bf16.mxu0 0
    %767 = vmatpush2.bf16.msra.mxu0 0
    %768 = vmatprep.subr.bf16.mxu0 0
    %769 = vmatpush2.bf16.msra.mxu0 0
    %770 = vmatprep.subr.bf16.mxu0 0
    %771 = vmatpush2.bf16.msra.mxu0 0
    %772 = vmatprep.subr.bf16.mxu0 0
    %773 = vmatpush2.bf16.msra.mxu0 0
    %774 = vmatprep.subr.bf16.mxu0 0
    %775 = vmatpush2.bf16.msra.mxu0 0
    %776 = vmatprep.subr.bf16.mxu0 0
    %777 = vmatpush2.bf16.msra.mxu0 0
    %778 = vmatprep.subr.bf16.mxu0 0
    %779 = vmatpush2.bf16.msra.mxu0 0
    %780 = vmatprep.mubr.bf16.mxu0 0
    %781 = vmatmul.mubr.bf16.gmra.mxu0 %v747
    %v782 = vpop.f32.mrf.mxu0
    %v783 = vadd.f32 0.0, %v782
    %v784 = vpop.f32.mrf.mxu0
    %v785 = vadd.f32 0.0, %v784
    %v786 = vpop.f32.mrf.mxu0
    %v787 = vpop.f32.mrf.mxu0
    %788 = vdwg.mxu0
    %789 = vmatprep.subr.bf16.mxu0 %v485
    %790 = vmatpush1.bf16.msra.mxu0 %v484
    %791 = vmatprep.subr.bf16.mxu0 %v481
    %792 = vmatpush1.bf16.msra.mxu0 %v480
    %793 = vmatprep.subr.bf16.mxu0 %v477
    %794 = vmatpush1.bf16.msra.mxu0 %v476
    %795 = vmatprep.subr.bf16.mxu0 %v473
    %796 = vmatpush1.bf16.msra.mxu0 %v472
    %797 = vmatprep.subr.bf16.mxu0 %v469
    %798 = vmatpush1.bf16.msra.mxu0 %v468
    %799 = vmatprep.subr.bf16.mxu0 %v465
    %800 = vmatpush1.bf16.msra.mxu0 %v464
    %801 = vmatprep.subr.bf16.mxu0 %v461
    %802 = vmatpush1.bf16.msra.mxu0 %v460
    %803 = vmatprep.subr.bf16.mxu0 %v457
    %804 = vmatpush1.bf16.msra.mxu0 %v456
    %805 = vmatprep.subr.bf16.mxu0 0
    %806 = vmatpush2.bf16.msra.mxu0 0
    %807 = vmatprep.subr.bf16.mxu0 0
    %808 = vmatpush2.bf16.msra.mxu0 0
    %809 = vmatprep.subr.bf16.mxu0 0
    %810 = vmatpush2.bf16.msra.mxu0 0
    %811 = vmatprep.subr.bf16.mxu0 0
    %812 = vmatpush2.bf16.msra.mxu0 0
    %813 = vmatprep.subr.bf16.mxu0 0
    %814 = vmatpush2.bf16.msra.mxu0 0
    %815 = vmatprep.subr.bf16.mxu0 0
    %816 = vmatpush2.bf16.msra.mxu0 0
    %817 = vmatprep.subr.bf16.mxu0 0
    %818 = vmatpush2.bf16.msra.mxu0 0
    %819 = vmatprep.subr.bf16.mxu0 0
    %820 = vmatpush2.bf16.msra.mxu0 0
    %821 = vmatprep.mubr.bf16.mxu0 0
    %822 = vmatmul.mubr.bf16.gmra.mxu0 %v747
    %v823 = vpop.f32.mrf.mxu0
    %v824 = vadd.f32 0.0, %v823
    %v825 = vpop.f32.mrf.mxu0
    %v826 = vadd.f32 0.0, %v825
    %v827 = vpop.f32.mrf.mxu0
    %v828 = vpop.f32.mrf.mxu0
    %829 = vdwg.mxu0
    %v830 = vadd.f32 %v743, %v783
    %v831 = vadd.f32 %v744, %v785
    %v832 = vadd.f32 %v745, %v824
    %v833 = vadd.f32 %v746, %v826
    %v834 = vxor.u32 %v830, 2147483648
    %v835 = vmul.f32 %v834, 1.442695
    %v836 = vpow.pop %v835
    %v837 = vadd.f32 %v836, 1.0
    %v838 = vrcp.pop %v837
    %v839 = vmul.f32 1.0, %v838
    %v840 = vxor.u32 %v831, 2147483648
    %v841 = vmul.f32 %v840, 1.442695
    %v842 = vpow.pop %v841
    %v843 = vadd.f32 %v842, 1.0
    %v844 = vrcp.pop %v843
    %v845 = vmul.f32 1.0, %v844
    %v846 = vtanh.pop %v832
    %v847 = vxor.u32 %v833, 2147483648
    %v848 = vmul.f32 %v847, 1.442695
    %v849 = vpow.pop %v848
    %v850 = vadd.f32 %v849, 1.0
    %v851 = vrcp.pop %v850
    %v852 = vmul.f32 1.0, %v851
    %v853 = vmul.f32 %v845, %v740
    %v854 = vmul.f32 %v839, %v846
    %v855 = vadd.f32 %v853, %v854
    %v856 = vtanh.pop %v855
    %v857 = vmul.f32 %v852, %v856
    %v858 = vld [vmem:[#allocation2 + $0x60] sm:$0xff]
    %v859 = vld [vmem:[#allocation2 + $0x68] sm:$0xff]
    %v860 = vld [vmem:[#allocation2 + $0x70] sm:$0xff]
    %v861 = vld [vmem:[#allocation2 + $0x78] sm:$0xff]
    %v862 = vpack.c.bf16 %v857, %v857
    %863 = vmatprep.subr.bf16.mxu0 %v483
    %864 = vmatpush1.bf16.msra.mxu0 %v482
    %865 = vmatprep.subr.bf16.mxu0 %v479
    %866 = vmatpush1.bf16.msra.mxu0 %v478
    %867 = vmatprep.subr.bf16.mxu0 %v475
    %868 = vmatpush1.bf16.msra.mxu0 %v474
    %869 = vmatprep.subr.bf16.mxu0 %v471
    %870 = vmatpush1.bf16.msra.mxu0 %v470
    %871 = vmatprep.subr.bf16.mxu0 %v467
    %872 = vmatpush1.bf16.msra.mxu0 %v466
    %873 = vmatprep.subr.bf16.mxu0 %v463
    %874 = vmatpush1.bf16.msra.mxu0 %v462
    %875 = vmatprep.subr.bf16.mxu0 %v459
    %876 = vmatpush1.bf16.msra.mxu0 %v458
    %877 = vmatprep.subr.bf16.mxu0 %v455
    %878 = vmatpush1.bf16.msra.mxu0 %v454
    %879 = vmatprep.subr.bf16.mxu0 0
    %880 = vmatpush2.bf16.msra.mxu0 0
    %881 = vmatprep.subr.bf16.mxu0 0
    %882 = vmatpush2.bf16.msra.mxu0 0
    %883 = vmatprep.subr.bf16.mxu0 0
    %884 = vmatpush2.bf16.msra.mxu0 0
    %885 = vmatprep.subr.bf16.mxu0 0
    %886 = vmatpush2.bf16.msra.mxu0 0
    %887 = vmatprep.subr.bf16.mxu0 0
    %888 = vmatpush2.bf16.msra.mxu0 0
    %889 = vmatprep.subr.bf16.mxu0 0
    %890 = vmatpush2.bf16.msra.mxu0 0
    %891 = vmatprep.subr.bf16.mxu0 0
    %892 = vmatpush2.bf16.msra.mxu0 0
    %893 = vmatprep.subr.bf16.mxu0 0
    %894 = vmatpush2.bf16.msra.mxu0 0
    %895 = vmatprep.mubr.bf16.mxu0 0
    %896 = vmatmul.mubr.bf16.gmra.mxu0 %v862
    %v897 = vpop.f32.mrf.mxu0
    %v898 = vadd.f32 0.0, %v897
    %v899 = vpop.f32.mrf.mxu0
    %v900 = vadd.f32 0.0, %v899
    %v901 = vpop.f32.mrf.mxu0
    %v902 = vpop.f32.mrf.mxu0
    %903 = vdwg.mxu0
    %904 = vmatprep.subr.bf16.mxu0 %v485
    %905 = vmatpush1.bf16.msra.mxu0 %v484
    %906 = vmatprep.subr.bf16.mxu0 %v481
    %907 = vmatpush1.bf16.msra.mxu0 %v480
    %908 = vmatprep.subr.bf16.mxu0 %v477
    %909 = vmatpush1.bf16.msra.mxu0 %v476
    %910 = vmatprep.subr.bf16.mxu0 %v473
    %911 = vmatpush1.bf16.msra.mxu0 %v472
    %912 = vmatprep.subr.bf16.mxu0 %v469
    %913 = vmatpush1.bf16.msra.mxu0 %v468
    %914 = vmatprep.subr.bf16.mxu0 %v465
    %915 = vmatpush1.bf16.msra.mxu0 %v464
    %916 = vmatprep.subr.bf16.mxu0 %v461
    %917 = vmatpush1.bf16.msra.mxu0 %v460
    %918 = vmatprep.subr.bf16.mxu0 %v457
    %919 = vmatpush1.bf16.msra.mxu0 %v456
    %920 = vmatprep.subr.bf16.mxu0 0
    %921 = vmatpush2.bf16.msra.mxu0 0
    %922 = vmatprep.subr.bf16.mxu0 0
    %923 = vmatpush2.bf16.msra.mxu0 0
    %924 = vmatprep.subr.bf16.mxu0 0
    %925 = vmatpush2.bf16.msra.mxu0 0
    %926 = vmatprep.subr.bf16.mxu0 0
    %927 = vmatpush2.bf16.msra.mxu0 0
    %928 = vmatprep.subr.bf16.mxu0 0
    %929 = vmatpush2.bf16.msra.mxu0 0
    %930 = vmatprep.subr.bf16.mxu0 0
    %931 = vmatpush2.bf16.msra.mxu0 0
    %932 = vmatprep.subr.bf16.mxu0 0
    %933 = vmatpush2.bf16.msra.mxu0 0
    %934 = vmatprep.subr.bf16.mxu0 0
    %935 = vmatpush2.bf16.msra.mxu0 0
    %936 = vmatprep.mubr.bf16.mxu0 0
    %937 = vmatmul.mubr.bf16.gmra.mxu0 %v862
    %v938 = vpop.f32.mrf.mxu0
    %v939 = vadd.f32 0.0, %v938
    %v940 = vpop.f32.mrf.mxu0
    %v941 = vadd.f32 0.0, %v940
    %v942 = vpop.f32.mrf.mxu0
    %v943 = vpop.f32.mrf.mxu0
    %944 = vdwg.mxu0
    %v945 = vadd.f32 %v858, %v898
    %v946 = vadd.f32 %v859, %v900
    %v947 = vadd.f32 %v860, %v939
    %v948 = vadd.f32 %v861, %v941
    %v949 = vxor.u32 %v945, 2147483648
    %v950 = vmul.f32 %v949, 1.442695
    %v951 = vpow.pop %v950
    %v952 = vadd.f32 %v951, 1.0
    %v953 = vrcp.pop %v952
    %v954 = vmul.f32 1.0, %v953
    %v955 = vxor.u32 %v946, 2147483648
    %v956 = vmul.f32 %v955, 1.442695
    %v957 = vpow.pop %v956
    %v958 = vadd.f32 %v957, 1.0
    %v959 = vrcp.pop %v958
    %v960 = vmul.f32 1.0, %v959
    %v961 = vtanh.pop %v947
    %v962 = vxor.u32 %v948, 2147483648
    %v963 = vmul.f32 %v962, 1.442695
    %v964 = vpow.pop %v963
    %v965 = vadd.f32 %v964, 1.0
    %v966 = vrcp.pop %v965
    %v967 = vmul.f32 1.0, %v966
    %v968 = vmul.f32 %v960, %v855
    %v969 = vmul.f32 %v954, %v961
    %v970 = vadd.f32 %v968, %v969
    %v971 = vtanh.pop %v970
    %v972 = vmul.f32 %v967, %v971
    %v973 = vld [vmem:[#allocation2 + $0x80] sm:$0xff]
    %v974 = vld [vmem:[#allocation2 + $0x88] sm:$0xff]
    %v975 = vld [vmem:[#allocation2 + $0x90] sm:$0xff]
    %v976 = vld [vmem:[#allocation2 + $0x98] sm:$0xff]
    %v977 = vpack.c.bf16 %v972, %v972
    %978 = vmatprep.subr.bf16.mxu0 %v483
    %979 = vmatpush1.bf16.msra.mxu0 %v482
    %980 = vmatprep.subr.bf16.mxu0 %v479
    %981 = vmatpush1.bf16.msra.mxu0 %v478
    %982 = vmatprep.subr.bf16.mxu0 %v475
    %983 = vmatpush1.bf16.msra.mxu0 %v474
    %984 = vmatprep.subr.bf16.mxu0 %v471
    %985 = vmatpush1.bf16.msra.mxu0 %v470
    %986 = vmatprep.subr.bf16.mxu0 %v467
    %987 = vmatpush1.bf16.msra.mxu0 %v466
    %988 = vmatprep.subr.bf16.mxu0 %v463
    %989 = vmatpush1.bf16.msra.mxu0 %v462
    %990 = vmatprep.subr.bf16.mxu0 %v459
    %991 = vmatpush1.bf16.msra.mxu0 %v458
    %992 = vmatprep.subr.bf16.mxu0 %v455
    %993 = vmatpush1.bf16.msra.mxu0 %v454
    %994 = vmatprep.subr.bf16.mxu0 0
    %995 = vmatpush2.bf16.msra.mxu0 0
    %996 = vmatprep.subr.bf16.mxu0 0
    %997 = vmatpush2.bf16.msra.mxu0 0
    %998 = vmatprep.subr.bf16.mxu0 0
    %999 = vmatpush2.bf16.msra.mxu0 0
    %1000 = vmatprep.subr.bf16.mxu0 0
    %1001 = vmatpush2.bf16.msra.mxu0 0
    %1002 = vmatprep.subr.bf16.mxu0 0
    %1003 = vmatpush2.bf16.msra.mxu0 0
    %1004 = vmatprep.subr.bf16.mxu0 0
    %1005 = vmatpush2.bf16.msra.mxu0 0
    %1006 = vmatprep.subr.bf16.mxu0 0
    %1007 = vmatpush2.bf16.msra.mxu0 0
    %1008 = vmatprep.subr.bf16.mxu0 0
    %1009 = vmatpush2.bf16.msra.mxu0 0
    %1010 = vmatprep.mubr.bf16.mxu0 0
    %1011 = vmatmul.mubr.bf16.gmra.mxu0 %v977
    %v1012 = vpop.f32.mrf.mxu0
    %v1013 = vadd.f32 0.0, %v1012
    %v1014 = vpop.f32.mrf.mxu0
    %v1015 = vadd.f32 0.0, %v1014
    %v1016 = vpop.f32.mrf.mxu0
    %v1017 = vpop.f32.mrf.mxu0
    %1018 = vdwg.mxu0
    %1019 = vmatprep.subr.bf16.mxu0 %v485
    %1020 = vmatpush1.bf16.msra.mxu0 %v484
    %1021 = vmatprep.subr.bf16.mxu0 %v481
    %1022 = vmatpush1.bf16.msra.mxu0 %v480
    %1023 = vmatprep.subr.bf16.mxu0 %v477
    %1024 = vmatpush1.bf16.msra.mxu0 %v476
    %1025 = vmatprep.subr.bf16.mxu0 %v473
    %1026 = vmatpush1.bf16.msra.mxu0 %v472
    %1027 = vmatprep.subr.bf16.mxu0 %v469
    %1028 = vmatpush1.bf16.msra.mxu0 %v468
    %1029 = vmatprep.subr.bf16.mxu0 %v465
    %1030 = vmatpush1.bf16.msra.mxu0 %v464
    %1031 = vmatprep.subr.bf16.mxu0 %v461
    %1032 = vmatpush1.bf16.msra.mxu0 %v460
    %1033 = vmatprep.subr.bf16.mxu0 %v457
    %1034 = vmatpush1.bf16.msra.mxu0 %v456
    %1035 = vmatprep.subr.bf16.mxu0 0
    %1036 = vmatpush2.bf16.msra.mxu0 0
    %1037 = vmatprep.subr.bf16.mxu0 0
    %1038 = vmatpush2.bf16.msra.mxu0 0
    %1039 = vmatprep.subr.bf16.mxu0 0
    %1040 = vmatpush2.bf16.msra.mxu0 0
    %1041 = vmatprep.subr.bf16.mxu0 0
    %1042 = vmatpush2.bf16.msra.mxu0 0
    %1043 = vmatprep.subr.bf16.mxu0 0
    %1044 = vmatpush2.bf16.msra.mxu0 0
    %1045 = vmatprep.subr.bf16.mxu0 0
    %1046 = vmatpush2.bf16.msra.mxu0 0
    %1047 = vmatprep.subr.bf16.mxu0 0
    %1048 = vmatpush2.bf16.msra.mxu0 0
    %1049 = vmatprep.subr.bf16.mxu0 0
    %1050 = vmatpush2.bf16.msra.mxu0 0
    %1051 = vmatprep.mubr.bf16.mxu0 0
    %1052 = vmatmul.mubr.bf16.gmra.mxu0 %v977
    %v1053 = vpop.f32.mrf.mxu0
    %v1054 = vadd.f32 0.0, %v1053
    %v1055 = vpop.f32.mrf.mxu0
    %v1056 = vadd.f32 0.0, %v1055
    %v1057 = vpop.f32.mrf.mxu0
    %v1058 = vpop.f32.mrf.mxu0
    %1059 = vdwg.mxu0
    %v1060 = vadd.f32 %v973, %v1013
    %v1061 = vadd.f32 %v974, %v1015
    %v1062 = vadd.f32 %v975, %v1054
    %v1063 = vadd.f32 %v976, %v1056
    %v1064 = vxor.u32 %v1060, 2147483648
    %v1065 = vmul.f32 %v1064, 1.442695
    %v1066 = vpow.pop %v1065
    %v1067 = vadd.f32 %v1066, 1.0
    %v1068 = vrcp.pop %v1067
    %v1069 = vmul.f32 1.0, %v1068
    %v1070 = vxor.u32 %v1061, 2147483648
    %v1071 = vmul.f32 %v1070, 1.442695
    %v1072 = vpow.pop %v1071
    %v1073 = vadd.f32 %v1072, 1.0
    %v1074 = vrcp.pop %v1073
    %v1075 = vmul.f32 1.0, %v1074
    %v1076 = vtanh.pop %v1062
    %v1077 = vxor.u32 %v1063, 2147483648
    %v1078 = vmul.f32 %v1077, 1.442695
    %v1079 = vpow.pop %v1078
    %v1080 = vadd.f32 %v1079, 1.0
    %v1081 = vrcp.pop %v1080
    %v1082 = vmul.f32 1.0, %v1081
    %v1083 = vmul.f32 %v1075, %v970
    %v1084 = vmul.f32 %v1069, %v1076
    %v1085 = vadd.f32 %v1083, %v1084
    %v1086 = vtanh.pop %v1085
    %v1087 = vmul.f32 %v1082, %v1086
    %v1088 = vld [vmem:[#allocation2 + $0xa0] sm:$0xff]
    %v1089 = vld [vmem:[#allocation2 + $0xa8] sm:$0xff]
    %v1090 = vld [vmem:[#allocation2 + $0xb0] sm:$0xff]
    %v1091 = vld [vmem:[#allocation2 + $0xb8] sm:$0xff]
    %v1092 = vpack.c.bf16 %v1087, %v1087
    %1093 = vmatprep.subr.bf16.mxu0 %v483
    %1094 = vmatpush1.bf16.msra.mxu0 %v482
    %1095 = vmatprep.subr.bf16.mxu0 %v479
    %1096 = vmatpush1.bf16.msra.mxu0 %v478
    %1097 = vmatprep.subr.bf16.mxu0 %v475
    %1098 = vmatpush1.bf16.msra.mxu0 %v474
    %1099 = vmatprep.subr.bf16.mxu0 %v471
    %1100 = vmatpush1.bf16.msra.mxu0 %v470
    %1101 = vmatprep.subr.bf16.mxu0 %v467
    %1102 = vmatpush1.bf16.msra.mxu0 %v466
    %1103 = vmatprep.subr.bf16.mxu0 %v463
    %1104 = vmatpush1.bf16.msra.mxu0 %v462
    %1105 = vmatprep.subr.bf16.mxu0 %v459
    %1106 = vmatpush1.bf16.msra.mxu0 %v458
    %1107 = vmatprep.subr.bf16.mxu0 %v455
    %1108 = vmatpush1.bf16.msra.mxu0 %v454
    %1109 = vmatprep.subr.bf16.mxu0 0
    %1110 = vmatpush2.bf16.msra.mxu0 0
    %1111 = vmatprep.subr.bf16.mxu0 0
    %1112 = vmatpush2.bf16.msra.mxu0 0
    %1113 = vmatprep.subr.bf16.mxu0 0
    %1114 = vmatpush2.bf16.msra.mxu0 0
    %1115 = vmatprep.subr.bf16.mxu0 0
    %1116 = vmatpush2.bf16.msra.mxu0 0
    %1117 = vmatprep.subr.bf16.mxu0 0
    %1118 = vmatpush2.bf16.msra.mxu0 0
    %1119 = vmatprep.subr.bf16.mxu0 0
    %1120 = vmatpush2.bf16.msra.mxu0 0
    %1121 = vmatprep.subr.bf16.mxu0 0
    %1122 = vmatpush2.bf16.msra.mxu0 0
    %1123 = vmatprep.subr.bf16.mxu0 0
    %1124 = vmatpush2.bf16.msra.mxu0 0
    %1125 = vmatprep.mubr.bf16.mxu0 0
    %1126 = vmatmul.mubr.bf16.gmra.mxu0 %v1092
    %v1127 = vpop.f32.mrf.mxu0
    %v1128 = vadd.f32 0.0, %v1127
    %v1129 = vpop.f32.mrf.mxu0
    %v1130 = vadd.f32 0.0, %v1129
    %v1131 = vpop.f32.mrf.mxu0
    %v1132 = vpop.f32.mrf.mxu0
    %1133 = vdwg.mxu0
    %1134 = vmatprep.subr.bf16.mxu0 %v485
    %1135 = vmatpush1.bf16.msra.mxu0 %v484
    %1136 = vmatprep.subr.bf16.mxu0 %v481
    %1137 = vmatpush1.bf16.msra.mxu0 %v480
    %1138 = vmatprep.subr.bf16.mxu0 %v477
    %1139 = vmatpush1.bf16.msra.mxu0 %v476
    %1140 = vmatprep.subr.bf16.mxu0 %v473
    %1141 = vmatpush1.bf16.msra.mxu0 %v472
    %1142 = vmatprep.subr.bf16.mxu0 %v469
    %1143 = vmatpush1.bf16.msra.mxu0 %v468
    %1144 = vmatprep.subr.bf16.mxu0 %v465
    %1145 = vmatpush1.bf16.msra.mxu0 %v464
    %1146 = vmatprep.subr.bf16.mxu0 %v461
    %1147 = vmatpush1.bf16.msra.mxu0 %v460
    %1148 = vmatprep.subr.bf16.mxu0 %v457
    %1149 = vmatpush1.bf16.msra.mxu0 %v456
    %1150 = vmatprep.subr.bf16.mxu0 0
    %1151 = vmatpush2.bf16.msra.mxu0 0
    %1152 = vmatprep.subr.bf16.mxu0 0
    %1153 = vmatpush2.bf16.msra.mxu0 0
    %1154 = vmatprep.subr.bf16.mxu0 0
    %1155 = vmatpush2.bf16.msra.mxu0 0
    %1156 = vmatprep.subr.bf16.mxu0 0
    %1157 = vmatpush2.bf16.msra.mxu0 0
    %1158 = vmatprep.subr.bf16.mxu0 0
    %1159 = vmatpush2.bf16.msra.mxu0 0
    %1160 = vmatprep.subr.bf16.mxu0 0
    %1161 = vmatpush2.bf16.msra.mxu0 0
    %1162 = vmatprep.subr.bf16.mxu0 0
    %1163 = vmatpush2.bf16.msra.mxu0 0
    %1164 = vmatprep.subr.bf16.mxu0 0
    %1165 = vmatpush2.bf16.msra.mxu0 0
    %1166 = vmatprep.mubr.bf16.mxu0 0
    %1167 = vmatmul.mubr.bf16.gmra.mxu0 %v1092
    %v1168 = vpop.f32.mrf.mxu0
    %v1169 = vadd.f32 0.0, %v1168
    %v1170 = vpop.f32.mrf.mxu0
    %v1171 = vadd.f32 0.0, %v1170
    %v1172 = vpop.f32.mrf.mxu0
    %v1173 = vpop.f32.mrf.mxu0
    %1174 = vdwg.mxu0
    %v1175 = vadd.f32 %v1088, %v1128
    %v1176 = vadd.f32 %v1089, %v1130
    %v1177 = vadd.f32 %v1090, %v1169
    %v1178 = vadd.f32 %v1091, %v1171
    %v1179 = vxor.u32 %v1175, 2147483648
    %v1180 = vmul.f32 %v1179, 1.442695
    %v1181 = vpow.pop %v1180
    %v1182 = vadd.f32 %v1181, 1.0
    %v1183 = vrcp.pop %v1182
    %v1184 = vmul.f32 1.0, %v1183
    %v1185 = vxor.u32 %v1176, 2147483648
    %v1186 = vmul.f32 %v1185, 1.442695
    %v1187 = vpow.pop %v1186
    %v1188 = vadd.f32 %v1187, 1.0
    %v1189 = vrcp.pop %v1188
    %v1190 = vmul.f32 1.0, %v1189
    %v1191 = vtanh.pop %v1177
    %v1192 = vxor.u32 %v1178, 2147483648
    %v1193 = vmul.f32 %v1192, 1.442695
    %v1194 = vpow.pop %v1193
    %v1195 = vadd.f32 %v1194, 1.0
    %v1196 = vrcp.pop %v1195
    %v1197 = vmul.f32 1.0, %v1196
    %v1198 = vmul.f32 %v1190, %v1085
    %v1199 = vmul.f32 %v1184, %v1191
    %v1200 = vadd.f32 %v1198, %v1199
    %v1201 = vtanh.pop %v1200
    %v1202 = vmul.f32 %v1197, %v1201
    %v1203 = vld [vmem:[#allocation2 + $0xc0] sm:$0xff]
    %v1204 = vld [vmem:[#allocation2 + $0xc8] sm:$0xff]
    %v1205 = vld [vmem:[#allocation2 + $0xd0] sm:$0xff]
    %v1206 = vld [vmem:[#allocation2 + $0xd8] sm:$0xff]
    %v1207 = vpack.c.bf16 %v1202, %v1202
    %1208 = vmatprep.subr.bf16.mxu0 %v483
    %1209 = vmatpush1.bf16.msra.mxu0 %v482
    %1210 = vmatprep.subr.bf16.mxu0 %v479
    %1211 = vmatpush1.bf16.msra.mxu0 %v478
    %1212 = vmatprep.subr.bf16.mxu0 %v475
    %1213 = vmatpush1.bf16.msra.mxu0 %v474
    %1214 = vmatprep.subr.bf16.mxu0 %v471
    %1215 = vmatpush1.bf16.msra.mxu0 %v470
    %1216 = vmatprep.subr.bf16.mxu0 %v467
    %1217 = vmatpush1.bf16.msra.mxu0 %v466
    %1218 = vmatprep.subr.bf16.mxu0 %v463
    %1219 = vmatpush1.bf16.msra.mxu0 %v462
    %1220 = vmatprep.subr.bf16.mxu0 %v459
    %1221 = vmatpush1.bf16.msra.mxu0 %v458
    %1222 = vmatprep.subr.bf16.mxu0 %v455
    %1223 = vmatpush1.bf16.msra.mxu0 %v454
    %1224 = vmatprep.subr.bf16.mxu0 0
    %1225 = vmatpush2.bf16.msra.mxu0 0
    %1226 = vmatprep.subr.bf16.mxu0 0
    %1227 = vmatpush2.bf16.msra.mxu0 0
    %1228 = vmatprep.subr.bf16.mxu0 0
    %1229 = vmatpush2.bf16.msra.mxu0 0
    %1230 = vmatprep.subr.bf16.mxu0 0
    %1231 = vmatpush2.bf16.msra.mxu0 0
    %1232 = vmatprep.subr.bf16.mxu0 0
    %1233 = vmatpush2.bf16.msra.mxu0 0
    %1234 = vmatprep.subr.bf16.mxu0 0
    %1235 = vmatpush2.bf16.msra.mxu0 0
    %1236 = vmatprep.subr.bf16.mxu0 0
    %1237 = vmatpush2.bf16.msra.mxu0 0
    %1238 = vmatprep.subr.bf16.mxu0 0
    %1239 = vmatpush2.bf16.msra.mxu0 0
    %1240 = vmatprep.mubr.bf16.mxu0 0
    %1241 = vmatmul.mubr.bf16.gmra.mxu0 %v1207
    %v1242 = vpop.f32.mrf.mxu0
    %v1243 = vadd.f32 0.0, %v1242
    %v1244 = vpop.f32.mrf.mxu0
    %v1245 = vadd.f32 0.0, %v1244
    %v1246 = vpop.f32.mrf.mxu0
    %v1247 = vpop.f32.mrf.mxu0
    %1248 = vdwg.mxu0
    %1249 = vmatprep.subr.bf16.mxu0 %v485
    %1250 = vmatpush1.bf16.msra.mxu0 %v484
    %1251 = vmatprep.subr.bf16.mxu0 %v481
    %1252 = vmatpush1.bf16.msra.mxu0 %v480
    %1253 = vmatprep.subr.bf16.mxu0 %v477
    %1254 = vmatpush1.bf16.msra.mxu0 %v476
    %1255 = vmatprep.subr.bf16.mxu0 %v473
    %1256 = vmatpush1.bf16.msra.mxu0 %v472
    %1257 = vmatprep.subr.bf16.mxu0 %v469
    %1258 = vmatpush1.bf16.msra.mxu0 %v468
    %1259 = vmatprep.subr.bf16.mxu0 %v465
    %1260 = vmatpush1.bf16.msra.mxu0 %v464
    %1261 = vmatprep.subr.bf16.mxu0 %v461
    %1262 = vmatpush1.bf16.msra.mxu0 %v460
    %1263 = vmatprep.subr.bf16.mxu0 %v457
    %1264 = vmatpush1.bf16.msra.mxu0 %v456
    %1265 = vmatprep.subr.bf16.mxu0 0
    %1266 = vmatpush2.bf16.msra.mxu0 0
    %1267 = vmatprep.subr.bf16.mxu0 0
    %1268 = vmatpush2.bf16.msra.mxu0 0
    %1269 = vmatprep.subr.bf16.mxu0 0
    %1270 = vmatpush2.bf16.msra.mxu0 0
    %1271 = vmatprep.subr.bf16.mxu0 0
    %1272 = vmatpush2.bf16.msra.mxu0 0
    %1273 = vmatprep.subr.bf16.mxu0 0
    %1274 = vmatpush2.bf16.msra.mxu0 0
    %1275 = vmatprep.subr.bf16.mxu0 0
    %1276 = vmatpush2.bf16.msra.mxu0 0
    %1277 = vmatprep.subr.bf16.mxu0 0
    %1278 = vmatpush2.bf16.msra.mxu0 0
    %1279 = vmatprep.subr.bf16.mxu0 0
    %1280 = vmatpush2.bf16.msra.mxu0 0
    %1281 = vmatprep.mubr.bf16.mxu0 0
    %1282 = vmatmul.mubr.bf16.gmra.mxu0 %v1207
    %v1283 = vpop.f32.mrf.mxu0
    %v1284 = vadd.f32 0.0, %v1283
    %v1285 = vpop.f32.mrf.mxu0
    %v1286 = vadd.f32 0.0, %v1285
    %v1287 = vpop.f32.mrf.mxu0
    %v1288 = vpop.f32.mrf.mxu0
    %1289 = vdwg.mxu0
    %v1290 = vadd.f32 %v1203, %v1243
    %v1291 = vadd.f32 %v1204, %v1245
    %v1292 = vadd.f32 %v1205, %v1284
    %v1293 = vadd.f32 %v1206, %v1286
    %v1294 = vxor.u32 %v1290, 2147483648
    %v1295 = vmul.f32 %v1294, 1.442695
    %v1296 = vpow.pop %v1295
    %v1297 = vadd.f32 %v1296, 1.0
    %v1298 = vrcp.pop %v1297
    %v1299 = vmul.f32 1.0, %v1298
    %v1300 = vxor.u32 %v1291, 2147483648
    %v1301 = vmul.f32 %v1300, 1.442695
    %v1302 = vpow.pop %v1301
    %v1303 = vadd.f32 %v1302, 1.0
    %v1304 = vrcp.pop %v1303
    %v1305 = vmul.f32 1.0, %v1304
    %v1306 = vtanh.pop %v1292
    %v1307 = vxor.u32 %v1293, 2147483648
    %v1308 = vmul.f32 %v1307, 1.442695
    %v1309 = vpow.pop %v1308
    %v1310 = vadd.f32 %v1309, 1.0
    %v1311 = vrcp.pop %v1310
    %v1312 = vmul.f32 1.0, %v1311
    %v1313 = vmul.f32 %v1305, %v1200
    %v1314 = vmul.f32 %v1299, %v1306
    %v1315 = vadd.f32 %v1313, %v1314
    %v1316 = vtanh.pop %v1315
    %v1317 = vmul.f32 %v1312, %v1316
    %v1318 = vld [vmem:[#allocation2 + $0xe0] sm:$0xff]
    %v1319 = vld [vmem:[#allocation2 + $0xe8] sm:$0xff]
    %v1320 = vld [vmem:[#allocation2 + $0xf0] sm:$0xff]
    %v1321 = vld [vmem:[#allocation2 + $0xf8] sm:$0xff]
    %v1322 = vpack.c.bf16 %v1317, %v1317
    %1323 = vmatprep.subr.bf16.mxu0 %v483
    %1324 = vmatpush1.bf16.msra.mxu0 %v482
    %1325 = vmatprep.subr.bf16.mxu0 %v479
    %1326 = vmatpush1.bf16.msra.mxu0 %v478
    %1327 = vmatprep.subr.bf16.mxu0 %v475
    %1328 = vmatpush1.bf16.msra.mxu0 %v474
    %1329 = vmatprep.subr.bf16.mxu0 %v471
    %1330 = vmatpush1.bf16.msra.mxu0 %v470
    %1331 = vmatprep.subr.bf16.mxu0 %v467
    %1332 = vmatpush1.bf16.msra.mxu0 %v466
    %1333 = vmatprep.subr.bf16.mxu0 %v463
    %1334 = vmatpush1.bf16.msra.mxu0 %v462
    %1335 = vmatprep.subr.bf16.mxu0 %v459
    %1336 = vmatpush1.bf16.msra.mxu0 %v458
    %1337 = vmatprep.subr.bf16.mxu0 %v455
    %1338 = vmatpush1.bf16.msra.mxu0 %v454
    %1339 = vmatprep.subr.bf16.mxu0 0
    %1340 = vmatpush2.bf16.msra.mxu0 0
    %1341 = vmatprep.subr.bf16.mxu0 0
    %1342 = vmatpush2.bf16.msra.mxu0 0
    %1343 = vmatprep.subr.bf16.mxu0 0
    %1344 = vmatpush2.bf16.msra.mxu0 0
    %1345 = vmatprep.subr.bf16.mxu0 0
    %1346 = vmatpush2.bf16.msra.mxu0 0
    %1347 = vmatprep.subr.bf16.mxu0 0
    %1348 = vmatpush2.bf16.msra.mxu0 0
    %1349 = vmatprep.subr.bf16.mxu0 0
    %1350 = vmatpush2.bf16.msra.mxu0 0
    %1351 = vmatprep.subr.bf16.mxu0 0
    %1352 = vmatpush2.bf16.msra.mxu0 0
    %1353 = vmatprep.subr.bf16.mxu0 0
    %1354 = vmatpush2.bf16.msra.mxu0 0
    %1355 = vmatprep.mubr.bf16.mxu0 0
    %1356 = vmatmul.mubr.bf16.gmra.mxu0 %v1322
    %v1357 = vpop.f32.mrf.mxu0
    %v1358 = vadd.f32 0.0, %v1357
    %v1359 = vpop.f32.mrf.mxu0
    %v1360 = vadd.f32 0.0, %v1359
    %v1361 = vpop.f32.mrf.mxu0
    %v1362 = vpop.f32.mrf.mxu0
    %1363 = vdwg.mxu0
    %1364 = vmatprep.subr.bf16.mxu0 %v485
    %1365 = vmatpush1.bf16.msra.mxu0 %v484
    %1366 = vmatprep.subr.bf16.mxu0 %v481
    %1367 = vmatpush1.bf16.msra.mxu0 %v480
    %1368 = vmatprep.subr.bf16.mxu0 %v477
    %1369 = vmatpush1.bf16.msra.mxu0 %v476
    %1370 = vmatprep.subr.bf16.mxu0 %v473
    %1371 = vmatpush1.bf16.msra.mxu0 %v472
    %1372 = vmatprep.subr.bf16.mxu0 %v469
    %1373 = vmatpush1.bf16.msra.mxu0 %v468
    %1374 = vmatprep.subr.bf16.mxu0 %v465
    %1375 = vmatpush1.bf16.msra.mxu0 %v464
    %1376 = vmatprep.subr.bf16.mxu0 %v461
    %1377 = vmatpush1.bf16.msra.mxu0 %v460
    %1378 = vmatprep.subr.bf16.mxu0 %v457
    %1379 = vmatpush1.bf16.msra.mxu0 %v456
    %1380 = vmatprep.subr.bf16.mxu0 0
    %1381 = vmatpush2.bf16.msra.mxu0 0
    %1382 = vmatprep.subr.bf16.mxu0 0
    %1383 = vmatpush2.bf16.msra.mxu0 0
    %1384 = vmatprep.subr.bf16.mxu0 0
    %1385 = vmatpush2.bf16.msra.mxu0 0
    %1386 = vmatprep.subr.bf16.mxu0 0
    %1387 = vmatpush2.bf16.msra.mxu0 0
    %1388 = vmatprep.subr.bf16.mxu0 0
    %1389 = vmatpush2.bf16.msra.mxu0 0
    %1390 = vmatprep.subr.bf16.mxu0 0
    %1391 = vmatpush2.bf16.msra.mxu0 0
    %1392 = vmatprep.subr.bf16.mxu0 0
    %1393 = vmatpush2.bf16.msra.mxu0 0
    %1394 = vmatprep.subr.bf16.mxu0 0
    %1395 = vmatpush2.bf16.msra.mxu0 0
    %1396 = vmatprep.mubr.bf16.mxu0 0
    %1397 = vmatmul.mubr.bf16.gmra.mxu0 %v1322
    %v1398 = vpop.f32.mrf.mxu0
    %v1399 = vadd.f32 0.0, %v1398
    %v1400 = vpop.f32.mrf.mxu0
    %v1401 = vadd.f32 0.0, %v1400
    %v1402 = vpop.f32.mrf.mxu0
    %v1403 = vpop.f32.mrf.mxu0
    %1404 = vdwg.mxu0
    %v1405 = vadd.f32 %v1318, %v1358
    %v1406 = vadd.f32 %v1319, %v1360
    %v1407 = vadd.f32 %v1320, %v1399
    %v1408 = vadd.f32 %v1321, %v1401
    %v1409 = vxor.u32 %v1405, 2147483648
    %v1410 = vmul.f32 %v1409, 1.442695
    %v1411 = vpow.pop %v1410
    %v1412 = vadd.f32 %v1411, 1.0
    %v1413 = vrcp.pop %v1412
    %v1414 = vmul.f32 1.0, %v1413
    %v1415 = vxor.u32 %v1406, 2147483648
    %v1416 = vmul.f32 %v1415, 1.442695
    %v1417 = vpow.pop %v1416
    %v1418 = vadd.f32 %v1417, 1.0
    %v1419 = vrcp.pop %v1418
    %v1420 = vmul.f32 1.0, %v1419
    %v1421 = vtanh.pop %v1407
    %v1422 = vxor.u32 %v1408, 2147483648
    %v1423 = vmul.f32 %v1422, 1.442695
    %v1424 = vpow.pop %v1423
    %v1425 = vadd.f32 %v1424, 1.0
    %v1426 = vrcp.pop %v1425
    %v1427 = vmul.f32 1.0, %v1426
    %v1428 = vmul.f32 %v1420, %v1315
    %v1429 = vmul.f32 %v1414, %v1421
    %v1430 = vadd.f32 %v1428, %v1429
    %v1431 = vtanh.pop %v1430
    %v1432 = vmul.f32 %v1427, %v1431
    %v1433 = vpack.c.bf16 %v1432, %v1432
    %v1434 = vld [vmem:[#allocation6] sm:$0xf]
    %v1435 = vld [vmem:[#allocation6 + $0x4] sm:$0xf]
    %v1436 = vld [vmem:[#allocation6 + $0x8] sm:$0xf]
    %v1437 = vld [vmem:[#allocation6 + $0xc] sm:$0xf]
    %v1438 = vld [vmem:[#allocation6 + $0x10] sm:$0xf]
    %v1439 = vld [vmem:[#allocation6 + $0x14] sm:$0xf]
    %v1440 = vld [vmem:[#allocation6 + $0x18] sm:$0xf]
    %v1441 = vld [vmem:[#allocation6 + $0x1c] sm:$0xf]
    %v1442 = vld [vmem:[#allocation6 + $0x20] sm:$0xf]
    %v1443 = vld [vmem:[#allocation6 + $0x24] sm:$0xf]
    %v1444 = vld [vmem:[#allocation6 + $0x28] sm:$0xf]
    %v1445 = vld [vmem:[#allocation6 + $0x2c] sm:$0xf]
    %v1446 = vld [vmem:[#allocation6 + $0x30] sm:$0xf]
    %v1447 = vld [vmem:[#allocation6 + $0x34] sm:$0xf]
    %v1448 = vld [vmem:[#allocation6 + $0x38] sm:$0xf]
    %v1449 = vld [vmem:[#allocation6 + $0x3c] sm:$0xf]
    %v1450 = vld [vmem:[%s5] sm:$0x1]
    %v1452 = vlaneseq
    %v1453 = vshrl.u32 %v1452, 7
    %v1454 = vsub.s32 0, %v1453
    %v1455 = vrot.slane %v1450, %v1454
    %v1473 = vunpack.c.l.b16 %v1434
    %v1474 = vunpack.c.l.b16 %v1435
    %v1475 = vunpack.c.l.b16 %v1436
    %v1476 = vunpack.c.l.b16 %v1437
    %v1477 = vunpack.c.l.b16 %v1438
    %v1478 = vunpack.c.l.b16 %v1439
    %v1479 = vunpack.c.l.b16 %v1440
    %v1480 = vunpack.c.l.b16 %v1441
    %v1481 = vunpack.c.l.b16 %v1442
    %v1482 = vunpack.c.l.b16 %v1443
    %v1483 = vunpack.c.l.b16 %v1444
    %v1484 = vunpack.c.l.b16 %v1445
    %v1485 = vunpack.c.l.b16 %v1446
    %v1486 = vunpack.c.l.b16 %v1447
    %v1487 = vunpack.c.l.b16 %v1448
    %v1488 = vunpack.c.l.b16 %v1449
    %v1489 = vpack.c.b16 %v1474, %v1473
    %v1490 = vpack.c.b16 %v1476, %v1475
    %v1491 = vpack.c.b16 %v1478, %v1477
    %v1492 = vpack.c.b16 %v1480, %v1479
    %v1493 = vpack.c.b16 %v1482, %v1481
    %v1494 = vpack.c.b16 %v1484, %v1483
    %v1495 = vpack.c.b16 %v1486, %v1485
    %v1496 = vpack.c.b16 %v1488, %v1487
    %1505 = vmatprep.subr.bf16.mxu0 0
    %1506 = vmatpush1.bf16.msra.mxu0 %v1496
    %1507 = vmatprep.subr.bf16.mxu0 0
    %1508 = vmatpush1.bf16.msra.mxu0 %v1495
    %1509 = vmatprep.subr.bf16.mxu0 0
    %1510 = vmatpush1.bf16.msra.mxu0 %v1494
    %1511 = vmatprep.subr.bf16.mxu0 0
    %1512 = vmatpush1.bf16.msra.mxu0 %v1493
    %1513 = vmatprep.subr.bf16.mxu0 0
    %1514 = vmatpush1.bf16.msra.mxu0 %v1492
    %1515 = vmatprep.subr.bf16.mxu0 0
    %1516 = vmatpush1.bf16.msra.mxu0 %v1491
    %1517 = vmatprep.subr.bf16.mxu0 0
    %1518 = vmatpush1.bf16.msra.mxu0 %v1490
    %1519 = vmatprep.subr.bf16.mxu0 0
    %1520 = vmatpush1.bf16.msra.mxu0 %v1489
    %1521 = vmatprep.subr.bf16.mxu0 0
    %1522 = vmatpush2.bf16.msra.mxu0 0
    %1523 = vmatprep.subr.bf16.mxu0 0
    %1524 = vmatpush2.bf16.msra.mxu0 0
    %1525 = vmatprep.subr.bf16.mxu0 0
    %1526 = vmatpush2.bf16.msra.mxu0 0
    %1527 = vmatprep.subr.bf16.mxu0 0
    %1528 = vmatpush2.bf16.msra.mxu0 0
    %1529 = vmatprep.subr.bf16.mxu0 0
    %1530 = vmatpush2.bf16.msra.mxu0 0
    %1531 = vmatprep.subr.bf16.mxu0 0
    %1532 = vmatpush2.bf16.msra.mxu0 0
    %1533 = vmatprep.subr.bf16.mxu0 0
    %1534 = vmatpush2.bf16.msra.mxu0 0
    %1535 = vmatprep.subr.bf16.mxu0 0
    %1536 = vmatpush2.bf16.msra.mxu0 0
    %1537 = vmatprep.mubr.bf16.mxu0 0
    %1538 = vmatmul.mubr.bf16.gmra.mxu0 %v1433
    %v1539 = vpop.f32.mrf.mxu0
    %v1540 = vadd.f32 %v1455, %v1539
    %v1541 = vpop.f32.mrf.mxu0
    %v1542 = vpop.f32.mrf.mxu0
    %v1543 = vpop.f32.mrf.mxu0
    %1544 = vdwg.mxu0
    %v1545 = vld [vmem:[%s6] sm:$0xff]
    %v1546 = vadd.f32 %v1540, %v1545
    %1547 = vst [vmem:[#allocation8] sm:$0xff] %v1546
    // Predicated region
    $region38: #{tpu_custom_call.1} parent=1 // pred_check
      _
    $region39: #{tpu_custom_call.1} parent=1 // pred_check_branch
      %1549 = sbr.rel (0) target = $region41
    $region40: #{tpu_custom_call.1} parent=1 // pred_region
      %s1551 = ssub.s32 128, 128
      %1552 = vsyncadd [#allocation5], %s1551
      %s1554 = sshll.u32 [#allocation8], 4
      %s1555 = int_to_ptr.vmem [resolvable:$true] %s1554
      %1557 = dma.vmem_to_hbm [thread:$0]  %s1555, 128, %s7, [#allocation5]
    $region41: #{tpu_custom_call.1} parent=1 // pred_fallthru
      _
    // Predicated region
    $region42: #{tpu_custom_call.1} parent=1 // pred_check
      _
    $region43: #{tpu_custom_call.1} parent=1 // pred_check_branch
      %1559 = sbr.rel (0) target = $region45
    $region44: #{tpu_custom_call.1} parent=1 // pred_region
      %1560 = dma.done [#allocation5], 128
    $region45: #{tpu_custom_call.1} parent=1 // pred_fallthru
      _
    %1561 = vsyncpa [#allocation4], 1
    %1562 = vsyncpa [#allocation7], 1
    %1563 = vsyncpa [#allocation5], 1

</llo_original>
